<compile_context>
chip_gen: v7x
topology: tpu7x:2x2x1
jax: 0.10.0
libtpu: 0.0.40
codegen_flags: <defaults>
</compile_context>

<pallas_src>
import numpy as np
import jax
import jax.numpy as jnp
from jax import lax
from jax.experimental import pallas as pl
from jax.experimental.pallas import tpu as pltpu


# ----------------------------- config (small) -------------------------------
B = 2            # batch
N = 8            # node_size
T = 64           # time_series_size (divisible by p1*p2)
K = 3            # num_kernels (multi-view temporal kernels)
D = 5            # config.D (output_node_size)
KW = 7           # temporal kernel width for the multi-view convs
P1 = 4           # config.p1
P2 = 8           # config.p2
C = 4            # num_classes
M = K * D                      # output_time_feature_size
T1 = T // P1                   # time length after LTSA stage 1
T_OUT = T1 // P2               # output_time_series_size
HIDDEN = M * T_OUT             # flatten aggregate size
BN_EPS = 1e-5
BN_SCALE = float(1.0 / np.sqrt(1.0 + BN_EPS))   # eval-mode BN (mean=0, var=1, w=1, b=0)
ATTN_SCALE = float(1.0 / np.sqrt(M))
INV_SQRT_T = float(1.0 / np.sqrt(T))
PAD_L = KW // 2
NEG_INF = -1e30


def _gelu(x):
    # tanh-approximate GELU (lowers through the EUP tanh unit)
    c = float(np.sqrt(2.0 / np.pi))
    return 0.5 * x * (1.0 + jnp.tanh(c * (x + 0.044715 * x * x * x)))


# ---------------------- LTSA block: windowed attn + pool --------------------
def _local_attn_pool(x, wq, wk, wv, mask_add, pool, scale):
    """Windowed (block-diagonal) attention over time + window mean-pool.

    x: (M, T); mask_add: (T, T) additive block-diag mask; pool: (T, T//p) with
    1/p on each window strip.  The pool is folded into the attention matmul:
    out = v @ (attn^T @ pool)  -> (M, T//p).
    """
    q = jnp.dot(wq, x, preferred_element_type=jnp.float32)            # (M, T)
    k = jnp.dot(wk, x, preferred_element_type=jnp.float32)            # (M, T)
    v = jnp.dot(wv, x, preferred_element_type=jnp.float32)            # (M, T)
    scores = lax.dot_general(q, k, (((0,), (0,)), ((), ())),
                             preferred_element_type=jnp.float32) * scale + mask_add  # (T, T)
    scores = scores - jnp.max(scores, axis=-1, keepdims=True)
    e = jnp.exp(scores)
    attn = e / jnp.sum(e, axis=-1, keepdims=True)                      # (T, T) rows=queries
    # pooled_attn[j, w] = (1/p) * sum_{i in window w} attn[i, j]
    pooled_attn = lax.dot_general(attn, pool, (((0,), (0,)), ((), ())),
                                  preferred_element_type=jnp.float32)  # (T, T//p)
    return jnp.dot(v, pooled_attn, preferred_element_type=jnp.float32)  # (M, T//p)


# ----------------------------- fused forward kernel -------------------------
def dfast_fused_kernel(x_ref, wmva_ref, sdca_ref,
                       wq1_ref, wk1_ref, wv1_ref,
                       wq2_ref, wk2_ref, wv2_ref,
                       mask1_ref, pool1_ref, mask2_ref, pool2_ref,
                       fcw_ref, fcb_ref, o_ref):
    x = x_ref[0]                                                        # (N, T)

    # ---- MultiViewAttention (MVA): im2col slab via XLU rolls + ONE matmul ----
    # slab[j*N + n, t] = x[n, t + j - PAD_L]  (zero outside [0, T))
    cols = lax.broadcasted_iota(jnp.int32, (N, T), 1)
    chunks = []
    for j in range(KW):
        sh = j - PAD_L                                                  # -3 .. 3
        if sh == 0:
            chunks.append(x)
        else:
            r = pltpu.roll(x, shift=(-sh) % T, axis=1)                  # r[:, t] = x[:, (t+sh) % T]
            if sh > 0:
                r = jnp.where(cols < T - sh, r, 0.0)
            else:
                r = jnp.where(cols >= -sh, r, 0.0)
            chunks.append(r)
    slab = jnp.concatenate(chunks, axis=0)                              # (KW*N, T)
    h1 = _gelu(jnp.dot(wmva_ref[...], slab,
                       preferred_element_type=jnp.float32))             # (M, T)

    # ---- DynamicConnectogramAttention (DCA): node self-attn + spatial proj ----
    g = lax.dot_general(x, x, (((1,), (1,)), ((), ())),
                        preferred_element_type=jnp.float32) * INV_SQRT_T  # (N, N)
    g = g - jnp.max(g, axis=-1, keepdims=True)
    e = jnp.exp(g)
    a = e / jnp.sum(e, axis=-1, keepdims=True)
    xa = jnp.dot(a, x, preferred_element_type=jnp.float32)              # (N, T)
    h2 = _gelu(jnp.dot(sdca_ref[...], xa,
                       preferred_element_type=jnp.float32))             # (M, T)

    # ---- frequency/spatial fusion 'add' + eval-mode BatchNorm2d -------------
    z = (h1 + h2) * BN_SCALE                                            # (M, T)

    # ---- LTSA stage 1 (patch p1) and stage 2 (patch p2) ---------------------
    z1 = _local_attn_pool(z, wq1_ref[...], wk1_ref[...], wv1_ref[...],
                          mask1_ref[...], pool1_ref[...], ATTN_SCALE)   # (M, T1)
    z2 = _local_attn_pool(z1, wq2_ref[...], wk2_ref[...], wv2_ref[...],
                          mask2_ref[...], pool2_ref[...], ATTN_SCALE)   # (M, T_OUT)

    # ---- aggregate 'flatten' + fc + softmax (never materialized in HBM) -----
    # logits[c] = sum_{m,w} fc_w[c, m*T_OUT + w] * z2[m, w] + fc_b[c]
    s = jnp.zeros((M, C), jnp.float32)
    for w in range(T_OUT):
        s = s + z2[:, w:w + 1] * fcw_ref[w]                             # (M, C)
    logits = jnp.sum(s, axis=0, keepdims=True) + fcb_ref[...]           # (1, C)
    logits = logits - jnp.max(logits, axis=-1, keepdims=True)
    el = jnp.exp(logits)
    o_ref[0] = el / jnp.sum(el, axis=-1, keepdims=True)                 # softmax probs


# --------------------------- host-side constants -----------------------------
def _block_diag_mask(t, p):
    idx = np.arange(t)
    same = (idx[:, None] // p) == (idx[None, :] // p)
    return jnp.asarray(np.where(same, 0.0, NEG_INF).astype(np.float32))


def _window_pool(t, p):
    idx = np.arange(t)
    win = np.arange(t // p)
    m = (idx[:, None] // p) == win[None, :]
    return jnp.asarray((m.astype(np.float32) / float(p)))


# ------------------------------- full model ---------------------------------
def dfast_for_classification(x, labels, params):
    b = x.shape[0]

    # Fold temporal taps into the spatial weight (im2col weight, host side).
    # w_mva[k*D+d, j*N+n] = taps[k, j] * w[k, d, n]
    w_mva = jnp.einsum("kj,kdn->kdjn", params["mva_taps"],
                       params["mva_w"]).reshape(M, KW * N)
    # FC weight rearranged so the kernel contracts without reshaping z2:
    # fc_wr[w, m, c] = fc_w[c, m*T_OUT + w]
    fc_wr = params["fc_w"].reshape(C, M, T_OUT).transpose(2, 1, 0)
    fc_b = params["fc_b"].reshape(1, C)

    mask1 = _block_diag_mask(T, P1)
    pool1 = _window_pool(T, P1)
    mask2 = _block_diag_mask(T1, P2)
    pool2 = _window_pool(T1, P2)

    const2 = lambda i: (0, 0)
    const3 = lambda i: (0, 0, 0)

    probs3 = pl.pallas_call(
        dfast_fused_kernel,
        out_shape=jax.ShapeDtypeStruct((b, 1, C), jnp.float32),
        grid=(b,),
        in_specs=[
            pl.BlockSpec((1, N, T), lambda i: (i, 0, 0)),     # time series (per batch elem)
            pl.BlockSpec((M, KW * N), const2),                # MVA im2col weight (resident)
            pl.BlockSpec((M, N), const2),                     # DCA spatial projection
            pl.BlockSpec((M, M), const2),                     # wq1
            pl.BlockSpec((M, M), const2),                     # wk1
            pl.BlockSpec((M, M), const2),                     # wv1
            pl.BlockSpec((M, M), const2),                     # wq2
            pl.BlockSpec((M, M), const2),                     # wk2
            pl.BlockSpec((M, M), const2),                     # wv2
            pl.BlockSpec((T, T), const2),                     # stage-1 block-diag mask
            pl.BlockSpec((T, T1), const2),                    # stage-1 pool matrix
            pl.BlockSpec((T1, T1), const2),                   # stage-2 block-diag mask
            pl.BlockSpec((T1, T_OUT), const2),                # stage-2 pool matrix
            pl.BlockSpec((T_OUT, M, C), const3),              # rearranged FC weight
            pl.BlockSpec((1, C), const2),                     # FC bias
        ],
        out_specs=pl.BlockSpec((1, 1, C), lambda i: (i, 0, 0)),
        compiler_params=pltpu.CompilerParams(
            dimension_semantics=("parallel",)),               # both v7x TCs get work
    )(x, w_mva, params["dca_s"],
      params["wq1"], params["wk1"], params["wv1"],
      params["wq2"], params["wk2"], params["wv2"],
      mask1, pool1, mask2, pool2, fc_wr, fc_b)

    probs = probs3[:, 0, :]                                   # (B, C) softmax probs

    # CrossEntropyLoss(weight=class_weight) applied to the *softmaxed* probs,
    # exactly like the PyTorch forward.  (Cross-batch reduction stays in JAX.)
    logp = jax.nn.log_softmax(probs, axis=-1)
    nll = -jnp.take_along_axis(logp, labels[:, None], axis=-1)[:, 0]
    w = params["class_weight"][labels]
    loss = jnp.sum(w * nll) / jnp.sum(w)
    return probs, loss


# TODO(synk): MVA/DCA/LTSA reference source was unavailable; their residual /
# feed-forward / layer-norm internals (if any) are not reproduced here.

def init_params(key):
    ks = jax.random.split(key, 10)
    return {
        "mva_taps": (jax.random.normal(ks[0], (K, KW), jnp.float32) / KW),
        "mva_w": jax.random.normal(ks[1], (K, D, N), jnp.float32) / np.sqrt(N),
        "dca_s": jax.random.normal(ks[2], (M, N), jnp.float32) / np.sqrt(N),
        "wq1": jax.random.normal(ks[3], (M, M), jnp.float32) / np.sqrt(M),
        "wk1": jax.random.normal(ks[4], (M, M), jnp.float32) / np.sqrt(M),
        "wv1": jax.random.normal(ks[5], (M, M), jnp.float32) / np.sqrt(M),
        "wq2": jax.random.normal(ks[6], (M, M), jnp.float32) / np.sqrt(M),
        "wk2": jax.random.normal(ks[7], (M, M), jnp.float32) / np.sqrt(M),
        "wv2": jax.random.normal(ks[8], (M, M), jnp.float32) / np.sqrt(M),
        "fc_w": jax.random.normal(ks[9], (C, HIDDEN), jnp.float32) / np.sqrt(HIDDEN),
        "fc_b": jnp.zeros((C,), jnp.float32),
        "class_weight": jnp.ones((C,), jnp.float32),
    }


if __name__ == "__main__":
    key = jax.random.PRNGKey(0)
    k_x, k_p = jax.random.split(key)
    time_series = jax.random.normal(k_x, (B, N, T), jnp.float32)
    labels = jnp.array([0, 1], dtype=jnp.int32)
    params = init_params(k_p)

    fwd = jax.jit(dfast_for_classification)
    logits, loss = fwd(time_series, labels, params)
    jax.block_until_ready((logits, loss))

    assert logits.shape == (B, C)
    assert np.isfinite(np.asarray(loss))
    assert np.all(np.isfinite(np.asarray(logits)))
    print("KERNEL_OK")
</pallas_src>

<mosaic_0001>
module attributes {stable_mosaic.version = 11 : i64} {
  func.func @dfast_fused_kernel(%arg0: i32, %arg1: memref<1x8x64xf32, #tpu.memory_space<vmem>>, %arg2: memref<15x56xf32, #tpu.memory_space<vmem>>, %arg3: memref<15x8xf32, #tpu.memory_space<vmem>>, %arg4: memref<15x15xf32, #tpu.memory_space<vmem>>, %arg5: memref<15x15xf32, #tpu.memory_space<vmem>>, %arg6: memref<15x15xf32, #tpu.memory_space<vmem>>, %arg7: memref<15x15xf32, #tpu.memory_space<vmem>>, %arg8: memref<15x15xf32, #tpu.memory_space<vmem>>, %arg9: memref<15x15xf32, #tpu.memory_space<vmem>>, %arg10: memref<64x64xf32, #tpu.memory_space<vmem>>, %arg11: memref<64x16xf32, #tpu.memory_space<vmem>>, %arg12: memref<16x16xf32, #tpu.memory_space<vmem>>, %arg13: memref<16x2xf32, #tpu.memory_space<vmem>>, %arg14: memref<2x15x4xf32, #tpu.memory_space<vmem>>, %arg15: memref<1x4xf32, #tpu.memory_space<vmem>>, %arg16: memref<1x1x4xf32, #tpu.memory_space<vmem>>) attributes {dimension_semantics = [#tpu.dimension_semantics<parallel>], iteration_bounds = array<i64: 2>, scalar_prefetch = 0 : i64, scratch_operands = 0 : i64, tpu.core_type = #tpu.core_type<tc>, window_params = [{transform_indices = @transform_0, window_bounds = array<i64: 1, 8, 64>}, {pipeline_mode = #tpu.pipeline_mode<synchronous>, transform_indices = @transform_1, window_bounds = array<i64: 15, 56>}, {pipeline_mode = #tpu.pipeline_mode<synchronous>, transform_indices = @transform_2, window_bounds = array<i64: 15, 8>}, {pipeline_mode = #tpu.pipeline_mode<synchronous>, transform_indices = @transform_3, window_bounds = array<i64: 15, 15>}, {pipeline_mode = #tpu.pipeline_mode<synchronous>, transform_indices = @transform_4, window_bounds = array<i64: 15, 15>}, {pipeline_mode = #tpu.pipeline_mode<synchronous>, transform_indices = @transform_5, window_bounds = array<i64: 15, 15>}, {pipeline_mode = #tpu.pipeline_mode<synchronous>, transform_indices = @transform_6, window_bounds = array<i64: 15, 15>}, {pipeline_mode = #tpu.pipeline_mode<synchronous>, transform_indices = @transform_7, window_bounds = array<i64: 15, 15>}, {pipeline_mode = #tpu.pipeline_mode<synchronous>, transform_indices = @transform_8, window_bounds = array<i64: 15, 15>}, {pipeline_mode = #tpu.pipeline_mode<synchronous>, transform_indices = @transform_9, window_bounds = array<i64: 64, 64>}, {pipeline_mode = #tpu.pipeline_mode<synchronous>, transform_indices = @transform_10, window_bounds = array<i64: 64, 16>}, {pipeline_mode = #tpu.pipeline_mode<synchronous>, transform_indices = @transform_11, window_bounds = array<i64: 16, 16>}, {pipeline_mode = #tpu.pipeline_mode<synchronous>, transform_indices = @transform_12, window_bounds = array<i64: 16, 2>}, {pipeline_mode = #tpu.pipeline_mode<synchronous>, transform_indices = @transform_13, window_bounds = array<i64: 2, 15, 4>}, {pipeline_mode = #tpu.pipeline_mode<synchronous>, transform_indices = @transform_14, window_bounds = array<i64: 1, 4>}, {transform_indices = @transform_15, window_bounds = array<i64: 1, 1, 4>}]} {
    %c0 = arith.constant 0 : index
    %c0_0 = arith.constant 0 : index
    %c0_1 = arith.constant 0 : index
    %0 = vector.load %arg1[%c0, %c0_0, %c0_1] : memref<1x8x64xf32, #tpu.memory_space<vmem>>, vector<1x8x64xf32>
    %1 = vector.shape_cast %0 : vector<1x8x64xf32> to vector<8x64xf32>
    %2 = tpu.iota {dimensions = array<i32: 1>} : vector<8x64xi32>
    %c3_i32 = arith.constant 3 : i32
    %3 = tpu.dynamic_rotate %1 by %c3_i32 dim 1 : vector<8x64xf32>, i32 -> vector<8x64xf32>
    %c3_i32_2 = arith.constant 3 : i32
    %4 = vector.broadcast %c3_i32_2 : i32 to vector<8x64xi32>
    %5 = arith.cmpi sge, %2, %4 : vector<8x64xi32>
    %cst = arith.constant 0.000000e+00 : f32
    %6 = vector.broadcast %cst : f32 to vector<8x64xf32>
    %7 = arith.select %5, %3, %6 : vector<8x64xi1>, vector<8x64xf32>
    %c2_i32 = arith.constant 2 : i32
    %8 = tpu.dynamic_rotate %1 by %c2_i32 dim 1 : vector<8x64xf32>, i32 -> vector<8x64xf32>
    %c2_i32_3 = arith.constant 2 : i32
    %9 = vector.broadcast %c2_i32_3 : i32 to vector<8x64xi32>
    %10 = arith.cmpi sge, %2, %9 : vector<8x64xi32>
    %cst_4 = arith.constant 0.000000e+00 : f32
    %11 = vector.broadcast %cst_4 : f32 to vector<8x64xf32>
    %12 = arith.select %10, %8, %11 : vector<8x64xi1>, vector<8x64xf32>
    %c1_i32 = arith.constant 1 : i32
    %13 = tpu.dynamic_rotate %1 by %c1_i32 dim 1 : vector<8x64xf32>, i32 -> vector<8x64xf32>
    %c1_i32_5 = arith.constant 1 : i32
    %14 = vector.broadcast %c1_i32_5 : i32 to vector<8x64xi32>
    %15 = arith.cmpi sge, %2, %14 : vector<8x64xi32>
    %cst_6 = arith.constant 0.000000e+00 : f32
    %16 = vector.broadcast %cst_6 : f32 to vector<8x64xf32>
    %17 = arith.select %15, %13, %16 : vector<8x64xi1>, vector<8x64xf32>
    %c63_i32 = arith.constant 63 : i32
    %18 = tpu.dynamic_rotate %1 by %c63_i32 dim 1 : vector<8x64xf32>, i32 -> vector<8x64xf32>
    %c63_i32_7 = arith.constant 63 : i32
    %19 = vector.broadcast %c63_i32_7 : i32 to vector<8x64xi32>
    %20 = arith.cmpi slt, %2, %19 : vector<8x64xi32>
    %cst_8 = arith.constant 0.000000e+00 : f32
    %21 = vector.broadcast %cst_8 : f32 to vector<8x64xf32>
    %22 = arith.select %20, %18, %21 : vector<8x64xi1>, vector<8x64xf32>
    %c62_i32 = arith.constant 62 : i32
    %23 = tpu.dynamic_rotate %1 by %c62_i32 dim 1 : vector<8x64xf32>, i32 -> vector<8x64xf32>
    %c62_i32_9 = arith.constant 62 : i32
    %24 = vector.broadcast %c62_i32_9 : i32 to vector<8x64xi32>
    %25 = arith.cmpi slt, %2, %24 : vector<8x64xi32>
    %cst_10 = arith.constant 0.000000e+00 : f32
    %26 = vector.broadcast %cst_10 : f32 to vector<8x64xf32>
    %27 = arith.select %25, %23, %26 : vector<8x64xi1>, vector<8x64xf32>
    %c61_i32 = arith.constant 61 : i32
    %28 = tpu.dynamic_rotate %1 by %c61_i32 dim 1 : vector<8x64xf32>, i32 -> vector<8x64xf32>
    %c61_i32_11 = arith.constant 61 : i32
    %29 = vector.broadcast %c61_i32_11 : i32 to vector<8x64xi32>
    %30 = arith.cmpi slt, %2, %29 : vector<8x64xi32>
    %cst_12 = arith.constant 0.000000e+00 : f32
    %31 = vector.broadcast %cst_12 : f32 to vector<8x64xf32>
    %32 = arith.select %30, %28, %31 : vector<8x64xi1>, vector<8x64xf32>
    %33 = tpu.concatenate %7, %12, %17, %1, %22, %27, %32 in 0 : vector<8x64xf32>, vector<8x64xf32>, vector<8x64xf32>, vector<8x64xf32>, vector<8x64xf32>, vector<8x64xf32>, vector<8x64xf32> -> vector<56x64xf32>
    %c0_13 = arith.constant 0 : index
    %c0_14 = arith.constant 0 : index
    %34 = vector.load %arg2[%c0_13, %c0_14] : memref<15x56xf32, #tpu.memory_space<vmem>>, vector<15x56xf32>
    %cst_15 = arith.constant dense<0.000000e+00> : vector<15x64xf32>
    %35 = tpu.matmul %34, %33, %cst_15 {dimension_numbers = #tpu.dot_dimension_numbers<[1], [0], [0], [1], [0, 0, 1, 1], [], []>} : vector<15x56xf32>, vector<56x64xf32>, vector<15x64xf32> -> vector<15x64xf32>
    %cst_16 = arith.constant 5.000000e-01 : f32
    %36 = vector.broadcast %cst_16 : f32 to vector<15x64xf32>
    %37 = arith.mulf %36, %35 : vector<15x64xf32>
    %cst_17 = arith.constant 4.471500e-02 : f32
    %38 = vector.broadcast %cst_17 : f32 to vector<15x64xf32>
    %39 = arith.mulf %38, %35 : vector<15x64xf32>
    %40 = arith.mulf %39, %35 : vector<15x64xf32>
    %41 = arith.mulf %40, %35 : vector<15x64xf32>
    %42 = arith.addf %35, %41 : vector<15x64xf32>
    %cst_18 = arith.constant 0.797884583 : f32
    %43 = vector.broadcast %cst_18 : f32 to vector<15x64xf32>
    %44 = arith.mulf %43, %42 : vector<15x64xf32>
    %45 = math.tanh %44 : vector<15x64xf32>
    %cst_19 = arith.constant 1.000000e+00 : f32
    %46 = vector.broadcast %cst_19 : f32 to vector<15x64xf32>
    %47 = arith.addf %46, %45 : vector<15x64xf32>
    %48 = arith.mulf %37, %47 : vector<15x64xf32>
    %cst_20 = arith.constant dense<0.000000e+00> : vector<8x8xf32>
    %49 = tpu.matmul %1, %1, %cst_20 {dimension_numbers = #tpu.dot_dimension_numbers<[1], [1], [0], [0], [0, 0, 1, 0], [], []>} : vector<8x64xf32>, vector<8x64xf32>, vector<8x8xf32> -> vector<8x8xf32>
    %cst_21 = arith.constant 1.250000e-01 : f32
    %50 = vector.broadcast %cst_21 : f32 to vector<8x8xf32>
    %51 = arith.mulf %49, %50 : vector<8x8xf32>
    %cst_22 = arith.constant dense<0xFF800000> : vector<8xf32>
    %52 = vector.multi_reduction <maximumf>, %51, %cst_22 [1] : vector<8x8xf32> to vector<8xf32>
    %53 = vector.shape_cast %52 : vector<8xf32> to vector<8x1xf32>
    %54 = vector.broadcast %53 : vector<8x1xf32> to vector<8x8xf32>
    %55 = arith.subf %51, %54 : vector<8x8xf32>
    %56 = math.exp %55 : vector<8x8xf32>
    %cst_23 = arith.constant dense<0.000000e+00> : vector<8xf32>
    %57 = vector.multi_reduction <add>, %56, %cst_23 [1] : vector<8x8xf32> to vector<8xf32>
    %58 = vector.shape_cast %57 : vector<8xf32> to vector<8x1xf32>
    %59 = vector.broadcast %58 : vector<8x1xf32> to vector<8x8xf32>
    %60 = arith.divf %56, %59 : vector<8x8xf32>
    %cst_24 = arith.constant dense<0.000000e+00> : vector<8x64xf32>
    %61 = tpu.matmul %60, %1, %cst_24 {dimension_numbers = #tpu.dot_dimension_numbers<[1], [0], [0], [1], [0, 0, 1, 1], [], []>} : vector<8x8xf32>, vector<8x64xf32>, vector<8x64xf32> -> vector<8x64xf32>
    %c0_25 = arith.constant 0 : index
    %c0_26 = arith.constant 0 : index
    %62 = vector.load %arg3[%c0_25, %c0_26] : memref<15x8xf32, #tpu.memory_space<vmem>>, vector<15x8xf32>
    %cst_27 = arith.constant dense<0.000000e+00> : vector<15x64xf32>
    %63 = tpu.matmul %62, %61, %cst_27 {dimension_numbers = #tpu.dot_dimension_numbers<[1], [0], [0], [1], [0, 0, 1, 1], [], []>} : vector<15x8xf32>, vector<8x64xf32>, vector<15x64xf32> -> vector<15x64xf32>
    %cst_28 = arith.constant 5.000000e-01 : f32
    %64 = vector.broadcast %cst_28 : f32 to vector<15x64xf32>
    %65 = arith.mulf %64, %63 : vector<15x64xf32>
    %cst_29 = arith.constant 4.471500e-02 : f32
    %66 = vector.broadcast %cst_29 : f32 to vector<15x64xf32>
    %67 = arith.mulf %66, %63 : vector<15x64xf32>
    %68 = arith.mulf %67, %63 : vector<15x64xf32>
    %69 = arith.mulf %68, %63 : vector<15x64xf32>
    %70 = arith.addf %63, %69 : vector<15x64xf32>
    %cst_30 = arith.constant 0.797884583 : f32
    %71 = vector.broadcast %cst_30 : f32 to vector<15x64xf32>
    %72 = arith.mulf %71, %70 : vector<15x64xf32>
    %73 = math.tanh %72 : vector<15x64xf32>
    %cst_31 = arith.constant 1.000000e+00 : f32
    %74 = vector.broadcast %cst_31 : f32 to vector<15x64xf32>
    %75 = arith.addf %74, %73 : vector<15x64xf32>
    %76 = arith.mulf %65, %75 : vector<15x64xf32>
    %77 = arith.addf %48, %76 : vector<15x64xf32>
    %cst_32 = arith.constant 0.999994993 : f32
    %78 = vector.broadcast %cst_32 : f32 to vector<15x64xf32>
    %79 = arith.mulf %77, %78 : vector<15x64xf32>
    %c0_33 = arith.constant 0 : index
    %c0_34 = arith.constant 0 : index
    %80 = vector.load %arg4[%c0_33, %c0_34] : memref<15x15xf32, #tpu.memory_space<vmem>>, vector<15x15xf32>
    %c0_35 = arith.constant 0 : index
    %c0_36 = arith.constant 0 : index
    %81 = vector.load %arg5[%c0_35, %c0_36] : memref<15x15xf32, #tpu.memory_space<vmem>>, vector<15x15xf32>
    %c0_37 = arith.constant 0 : index
    %c0_38 = arith.constant 0 : index
    %82 = vector.load %arg6[%c0_37, %c0_38] : memref<15x15xf32, #tpu.memory_space<vmem>>, vector<15x15xf32>
    %c0_39 = arith.constant 0 : index
    %c0_40 = arith.constant 0 : index
    %83 = vector.load %arg10[%c0_39, %c0_40] : memref<64x64xf32, #tpu.memory_space<vmem>>, vector<64x64xf32>
    %c0_41 = arith.constant 0 : index
    %c0_42 = arith.constant 0 : index
    %84 = vector.load %arg11[%c0_41, %c0_42] : memref<64x16xf32, #tpu.memory_space<vmem>>, vector<64x16xf32>
    %cst_43 = arith.constant dense<0.000000e+00> : vector<15x64xf32>
    %85 = tpu.matmul %80, %79, %cst_43 {dimension_numbers = #tpu.dot_dimension_numbers<[1], [0], [0], [1], [0, 0, 1, 1], [], []>} : vector<15x15xf32>, vector<15x64xf32>, vector<15x64xf32> -> vector<15x64xf32>
    %cst_44 = arith.constant dense<0.000000e+00> : vector<15x64xf32>
    %86 = tpu.matmul %81, %79, %cst_44 {dimension_numbers = #tpu.dot_dimension_numbers<[1], [0], [0], [1], [0, 0, 1, 1], [], []>} : vector<15x15xf32>, vector<15x64xf32>, vector<15x64xf32> -> vector<15x64xf32>
    %cst_45 = arith.constant dense<0.000000e+00> : vector<15x64xf32>
    %87 = tpu.matmul %82, %79, %cst_45 {dimension_numbers = #tpu.dot_dimension_numbers<[1], [0], [0], [1], [0, 0, 1, 1], [], []>} : vector<15x15xf32>, vector<15x64xf32>, vector<15x64xf32> -> vector<15x64xf32>
    %cst_46 = arith.constant dense<0.000000e+00> : vector<64x64xf32>
    %88 = tpu.matmul %85, %86, %cst_46 {dimension_numbers = #tpu.dot_dimension_numbers<[0], [0], [1], [1], [0, 1, 1, 1], [], []>} : vector<15x64xf32>, vector<15x64xf32>, vector<64x64xf32> -> vector<64x64xf32>
    %cst_47 = arith.constant 0.258198887 : f32
    %89 = vector.broadcast %cst_47 : f32 to vector<64x64xf32>
    %90 = arith.mulf %88, %89 : vector<64x64xf32>
    %91 = arith.addf %90, %83 : vector<64x64xf32>
    %cst_48 = arith.constant dense<0xFF800000> : vector<64xf32>
    %92 = vector.multi_reduction <maximumf>, %91, %cst_48 [1] : vector<64x64xf32> to vector<64xf32>
    %93 = vector.shape_cast %92 : vector<64xf32> to vector<64x1xf32>
    %94 = vector.broadcast %93 : vector<64x1xf32> to vector<64x64xf32>
    %95 = arith.subf %91, %94 : vector<64x64xf32>
    %96 = math.exp %95 : vector<64x64xf32>
    %cst_49 = arith.constant dense<0.000000e+00> : vector<64xf32>
    %97 = vector.multi_reduction <add>, %96, %cst_49 [1] : vector<64x64xf32> to vector<64xf32>
    %98 = vector.shape_cast %97 : vector<64xf32> to vector<64x1xf32>
    %99 = vector.broadcast %98 : vector<64x1xf32> to vector<64x64xf32>
    %100 = arith.divf %96, %99 : vector<64x64xf32>
    %cst_50 = arith.constant dense<0.000000e+00> : vector<64x16xf32>
    %101 = tpu.matmul %100, %84, %cst_50 {dimension_numbers = #tpu.dot_dimension_numbers<[0], [0], [1], [1], [0, 1, 1, 1], [], []>} : vector<64x64xf32>, vector<64x16xf32>, vector<64x16xf32> -> vector<64x16xf32>
    %cst_51 = arith.constant dense<0.000000e+00> : vector<15x16xf32>
    %102 = tpu.matmul %87, %101, %cst_51 {dimension_numbers = #tpu.dot_dimension_numbers<[1], [0], [0], [1], [0, 0, 1, 1], [], []>} : vector<15x64xf32>, vector<64x16xf32>, vector<15x16xf32> -> vector<15x16xf32>
    %c0_52 = arith.constant 0 : index
    %c0_53 = arith.constant 0 : index
    %103 = vector.load %arg7[%c0_52, %c0_53] : memref<15x15xf32, #tpu.memory_space<vmem>>, vector<15x15xf32>
    %c0_54 = arith.constant 0 : index
    %c0_55 = arith.constant 0 : index
    %104 = vector.load %arg8[%c0_54, %c0_55] : memref<15x15xf32, #tpu.memory_space<vmem>>, vector<15x15xf32>
    %c0_56 = arith.constant 0 : index
    %c0_57 = arith.constant 0 : index
    %105 = vector.load %arg9[%c0_56, %c0_57] : memref<15x15xf32, #tpu.memory_space<vmem>>, vector<15x15xf32>
    %c0_58 = arith.constant 0 : index
    %c0_59 = arith.constant 0 : index
    %106 = vector.load %arg12[%c0_58, %c0_59] : memref<16x16xf32, #tpu.memory_space<vmem>>, vector<16x16xf32>
    %c0_60 = arith.constant 0 : index
    %c0_61 = arith.constant 0 : index
    %107 = vector.load %arg13[%c0_60, %c0_61] : memref<16x2xf32, #tpu.memory_space<vmem>>, vector<16x2xf32>
    %cst_62 = arith.constant dense<0.000000e+00> : vector<15x16xf32>
    %108 = tpu.matmul %103, %102, %cst_62 {dimension_numbers = #tpu.dot_dimension_numbers<[1], [0], [0], [1], [0, 0, 1, 1], [], []>} : vector<15x15xf32>, vector<15x16xf32>, vector<15x16xf32> -> vector<15x16xf32>
    %cst_63 = arith.constant dense<0.000000e+00> : vector<15x16xf32>
    %109 = tpu.matmul %104, %102, %cst_63 {dimension_numbers = #tpu.dot_dimension_numbers<[1], [0], [0], [1], [0, 0, 1, 1], [], []>} : vector<15x15xf32>, vector<15x16xf32>, vector<15x16xf32> -> vector<15x16xf32>
    %cst_64 = arith.constant dense<0.000000e+00> : vector<15x16xf32>
    %110 = tpu.matmul %105, %102, %cst_64 {dimension_numbers = #tpu.dot_dimension_numbers<[1], [0], [0], [1], [0, 0, 1, 1], [], []>} : vector<15x15xf32>, vector<15x16xf32>, vector<15x16xf32> -> vector<15x16xf32>
    %cst_65 = arith.constant dense<0.000000e+00> : vector<16x16xf32>
    %111 = tpu.matmul %108, %109, %cst_65 {dimension_numbers = #tpu.dot_dimension_numbers<[0], [0], [1], [1], [0, 1, 1, 1], [], []>} : vector<15x16xf32>, vector<15x16xf32>, vector<16x16xf32> -> vector<16x16xf32>
    %cst_66 = arith.constant 0.258198887 : f32
    %112 = vector.broadcast %cst_66 : f32 to vector<16x16xf32>
    %113 = arith.mulf %111, %112 : vector<16x16xf32>
    %114 = arith.addf %113, %106 : vector<16x16xf32>
    %cst_67 = arith.constant dense<0xFF800000> : vector<16xf32>
    %115 = vector.multi_reduction <maximumf>, %114, %cst_67 [1] : vector<16x16xf32> to vector<16xf32>
    %116 = vector.shape_cast %115 : vector<16xf32> to vector<16x1xf32>
    %117 = vector.broadcast %116 : vector<16x1xf32> to vector<16x16xf32>
    %118 = arith.subf %114, %117 : vector<16x16xf32>
    %119 = math.exp %118 : vector<16x16xf32>
    %cst_68 = arith.constant dense<0.000000e+00> : vector<16xf32>
    %120 = vector.multi_reduction <add>, %119, %cst_68 [1] : vector<16x16xf32> to vector<16xf32>
    %121 = vector.shape_cast %120 : vector<16xf32> to vector<16x1xf32>
    %122 = vector.broadcast %121 : vector<16x1xf32> to vector<16x16xf32>
    %123 = arith.divf %119, %122 : vector<16x16xf32>
    %cst_69 = arith.constant dense<0.000000e+00> : vector<16x2xf32>
    %124 = tpu.matmul %123, %107, %cst_69 {dimension_numbers = #tpu.dot_dimension_numbers<[0], [0], [1], [1], [0, 1, 1, 1], [], []>} : vector<16x16xf32>, vector<16x2xf32>, vector<16x2xf32> -> vector<16x2xf32>
    %cst_70 = arith.constant dense<0.000000e+00> : vector<15x2xf32>
    %125 = tpu.matmul %110, %124, %cst_70 {dimension_numbers = #tpu.dot_dimension_numbers<[1], [0], [0], [1], [0, 0, 1, 1], [], []>} : vector<15x16xf32>, vector<16x2xf32>, vector<15x2xf32> -> vector<15x2xf32>
    %cst_71 = arith.constant 0.000000e+00 : f32
    %126 = vector.broadcast %cst_71 : f32 to vector<15x4xf32>
    %127 = vector.extract_strided_slice %125 {offsets = [0, 0], sizes = [15, 1], strides = [1, 1]} : vector<15x2xf32> to vector<15x1xf32>
    %c0_72 = arith.constant 0 : index
    %c0_73 = arith.constant 0 : index
    %c0_74 = arith.constant 0 : index
    %128 = vector.load %arg14[%c0_72, %c0_73, %c0_74] : memref<2x15x4xf32, #tpu.memory_space<vmem>>, vector<1x15x4xf32>
    %129 = vector.shape_cast %128 : vector<1x15x4xf32> to vector<15x4xf32>
    %130 = vector.broadcast %127 : vector<15x1xf32> to vector<15x4xf32>
    %131 = arith.mulf %130, %129 : vector<15x4xf32>
    %132 = arith.addf %126, %131 : vector<15x4xf32>
    %133 = vector.extract_strided_slice %125 {offsets = [0, 1], sizes = [15, 1], strides = [1, 1]} : vector<15x2xf32> to vector<15x1xf32>
    %c1 = arith.constant 1 : index
    %c0_75 = arith.constant 0 : index
    %c0_76 = arith.constant 0 : index
    %134 = vector.load %arg14[%c1, %c0_75, %c0_76] : memref<2x15x4xf32, #tpu.memory_space<vmem>>, vector<1x15x4xf32>
    %135 = vector.shape_cast %134 : vector<1x15x4xf32> to vector<15x4xf32>
    %136 = vector.broadcast %133 : vector<15x1xf32> to vector<15x4xf32>
    %137 = arith.mulf %136, %135 : vector<15x4xf32>
    %138 = arith.addf %132, %137 : vector<15x4xf32>
    %cst_77 = arith.constant dense<0.000000e+00> : vector<4xf32>
    %139 = vector.multi_reduction <add>, %138, %cst_77 [0] : vector<15x4xf32> to vector<4xf32>
    %140 = vector.shape_cast %139 : vector<4xf32> to vector<1x4xf32>
    %c0_78 = arith.constant 0 : index
    %c0_79 = arith.constant 0 : index
    %141 = vector.load %arg15[%c0_78, %c0_79] : memref<1x4xf32, #tpu.memory_space<vmem>>, vector<1x4xf32>
    %142 = arith.addf %140, %141 : vector<1x4xf32>
    %cst_80 = arith.constant dense<0xFF800000> : vector<1xf32>
    %143 = vector.multi_reduction <maximumf>, %142, %cst_80 [1] : vector<1x4xf32> to vector<1xf32>
    %144 = vector.shape_cast %143 : vector<1xf32> to vector<1x1xf32>
    %145 = vector.broadcast %144 : vector<1x1xf32> to vector<1x4xf32>
    %146 = arith.subf %142, %145 : vector<1x4xf32>
    %147 = math.exp %146 : vector<1x4xf32>
    %cst_81 = arith.constant dense<0.000000e+00> : vector<1xf32>
    %148 = vector.multi_reduction <add>, %147, %cst_81 [1] : vector<1x4xf32> to vector<1xf32>
    %149 = vector.shape_cast %148 : vector<1xf32> to vector<1x1xf32>
    %150 = vector.broadcast %149 : vector<1x1xf32> to vector<1x4xf32>
    %151 = arith.divf %147, %150 : vector<1x4xf32>
    %c0_82 = arith.constant 0 : index
    %c0_83 = arith.constant 0 : index
    %c0_84 = arith.constant 0 : index
    %152 = vector.load %arg16[%c0_82, %c0_83, %c0_84] : memref<1x1x4xf32, #tpu.memory_space<vmem>>, vector<1x1x4xf32>
    %153 = vector.shape_cast %152 : vector<1x1x4xf32> to vector<1x4xf32>
    %154 = vector.shape_cast %151 : vector<1x4xf32> to vector<1x1x4xf32>
    tpu.vector_store %arg16[%c0_82, %c0_83, %c0_84], %154 {strides = array<i32>} : memref<1x1x4xf32, #tpu.memory_space<vmem>>, vector<1x1x4xf32>,
    return
  }
  func.func @transform_0(%arg0: i32) -> (i32, i32, i32) {
    %c0_i32 = arith.constant 0 : i32
    %c0_i32_0 = arith.constant 0 : i32
    %c0_i32_1 = arith.constant 0 : i32
    return %arg0, %c0_i32, %c0_i32_0 : i32, i32, i32
  }
  func.func @transform_1(%arg0: i32) -> (i32, i32) {
    %c0_i32 = arith.constant 0 : i32
    %c0_i32_0 = arith.constant 0 : i32
    %c0_i32_1 = arith.constant 0 : i32
    return %c0_i32, %c0_i32_0 : i32, i32
  }
  func.func @transform_2(%arg0: i32) -> (i32, i32) {
    %c0_i32 = arith.constant 0 : i32
    %c0_i32_0 = arith.constant 0 : i32
    %c0_i32_1 = arith.constant 0 : i32
    return %c0_i32, %c0_i32_0 : i32, i32
  }
  func.func @transform_3(%arg0: i32) -> (i32, i32) {
    %c0_i32 = arith.constant 0 : i32
    %c0_i32_0 = arith.constant 0 : i32
    %c0_i32_1 = arith.constant 0 : i32
    return %c0_i32, %c0_i32_0 : i32, i32
  }
  func.func @transform_4(%arg0: i32) -> (i32, i32) {
    %c0_i32 = arith.constant 0 : i32
    %c0_i32_0 = arith.constant 0 : i32
    %c0_i32_1 = arith.constant 0 : i32
    return %c0_i32, %c0_i32_0 : i32, i32
  }
  func.func @transform_5(%arg0: i32) -> (i32, i32) {
    %c0_i32 = arith.constant 0 : i32
    %c0_i32_0 = arith.constant 0 : i32
    %c0_i32_1 = arith.constant 0 : i32
    return %c0_i32, %c0_i32_0 : i32, i32
  }
  func.func @transform_6(%arg0: i32) -> (i32, i32) {
    %c0_i32 = arith.constant 0 : i32
    %c0_i32_0 = arith.constant 0 : i32
    %c0_i32_1 = arith.constant 0 : i32
    return %c0_i32, %c0_i32_0 : i32, i32
  }
  func.func @transform_7(%arg0: i32) -> (i32, i32) {
    %c0_i32 = arith.constant 0 : i32
    %c0_i32_0 = arith.constant 0 : i32
    %c0_i32_1 = arith.constant 0 : i32
    return %c0_i32, %c0_i32_0 : i32, i32
  }
  func.func @transform_8(%arg0: i32) -> (i32, i32) {
    %c0_i32 = arith.constant 0 : i32
    %c0_i32_0 = arith.constant 0 : i32
    %c0_i32_1 = arith.constant 0 : i32
    return %c0_i32, %c0_i32_0 : i32, i32
  }
  func.func @transform_9(%arg0: i32) -> (i32, i32) {
    %c0_i32 = arith.constant 0 : i32
    %c0_i32_0 = arith.constant 0 : i32
    %c0_i32_1 = arith.constant 0 : i32
    return %c0_i32, %c0_i32_0 : i32, i32
  }
  func.func @transform_10(%arg0: i32) -> (i32, i32) {
    %c0_i32 = arith.constant 0 : i32
    %c0_i32_0 = arith.constant 0 : i32
    %c0_i32_1 = arith.constant 0 : i32
    return %c0_i32, %c0_i32_0 : i32, i32
  }
  func.func @transform_11(%arg0: i32) -> (i32, i32) {
    %c0_i32 = arith.constant 0 : i32
    %c0_i32_0 = arith.constant 0 : i32
    %c0_i32_1 = arith.constant 0 : i32
    return %c0_i32, %c0_i32_0 : i32, i32
  }
  func.func @transform_12(%arg0: i32) -> (i32, i32) {
    %c0_i32 = arith.constant 0 : i32
    %c0_i32_0 = arith.constant 0 : i32
    %c0_i32_1 = arith.constant 0 : i32
    return %c0_i32, %c0_i32_0 : i32, i32
  }
  func.func @transform_13(%arg0: i32) -> (i32, i32, i32) {
    %c0_i32 = arith.constant 0 : i32
    %c0_i32_0 = arith.constant 0 : i32
    %c0_i32_1 = arith.constant 0 : i32
    %c0_i32_2 = arith.constant 0 : i32
    return %c0_i32, %c0_i32_0, %c0_i32_1 : i32, i32, i32
  }
  func.func @transform_14(%arg0: i32) -> (i32, i32) {
    %c0_i32 = arith.constant 0 : i32
    %c0_i32_0 = arith.constant 0 : i32
    %c0_i32_1 = arith.constant 0 : i32
    return %c0_i32, %c0_i32_0 : i32, i32
  }
  func.func @transform_15(%arg0: i32) -> (i32, i32, i32) {
    %c0_i32 = arith.constant 0 : i32
    %c0_i32_0 = arith.constant 0 : i32
    %c0_i32_1 = arith.constant 0 : i32
    return %arg0, %c0_i32, %c0_i32_0 : i32, i32, i32
  }
}

</mosaic_0001>

<llo_original>
// kernel: dfast_for_classification.1
$region0: #{dfast_for_classification.1}
  #allocation0 [shape = 'u32[]', space=smem, size = 0x4, offset = 0x4, fixed_abs, tag = 'smem constant byte address 0x4 - core index']
  #allocation1 [shape = 'u32[144,128]{1,0:T(1,128)}', space=vmem, size = 0x12000, scoped, tag = 'internal scratch']
  %s0 = inlined_call_operand.vmem [shape: f32[2,8,64], index: 0, kind: input, shape index: {}]
  %s1 = inlined_call_operand.vmem [shape: f32[15,56], index: 1, kind: input, shape index: {}]
  %s2 = inlined_call_operand.vmem [shape: f32[15,8], index: 2, kind: input, shape index: {}]
  %s3 = inlined_call_operand.vmem [shape: f32[15,15], index: 3, kind: input, shape index: {}]
  %s4 = inlined_call_operand.vmem [shape: f32[15,15], index: 4, kind: input, shape index: {}]
  %s5 = inlined_call_operand.vmem [shape: f32[15,15], index: 5, kind: input, shape index: {}]
  %s6 = inlined_call_operand.vmem [shape: f32[15,15], index: 6, kind: input, shape index: {}]
  %s7 = inlined_call_operand.vmem [shape: f32[15,15], index: 7, kind: input, shape index: {}]
  %s8 = inlined_call_operand.vmem [shape: f32[15,15], index: 8, kind: input, shape index: {}]
  %s9 = inlined_call_operand.vmem [shape: f32[64,64], index: 9, kind: input, shape index: {}]
  %s10 = inlined_call_operand.vmem [shape: f32[64,16], index: 10, kind: input, shape index: {}]
  %s11 = inlined_call_operand.vmem [shape: f32[16,16], index: 11, kind: input, shape index: {}]
  %s12 = inlined_call_operand.vmem [shape: f32[16,2], index: 12, kind: input, shape index: {}]
  %s13 = inlined_call_operand.vmem [shape: f32[2,15,4], index: 13, kind: input, shape index: {}]
  %s14 = inlined_call_operand.vmem [shape: f32[1,4], index: 14, kind: input, shape index: {}]
  %s15 = inlined_call_operand.vmem [shape: f32[2,1,4], index: 15, kind: output, shape index: {}]
  %s16 = sld [smem:[#allocation0]]
  $region93: #{dfast_for_classification.1} parent=0
    _
  %s18 = ssub.s32 1, %s16
  %s19 = scalar_select 0, %s18, %s16
  loop: start=0, step=1, limit=4
  $region2: #{dfast_for_classification.1} parent=0 // loop_pre_header
    _
  $region3: #{dfast_for_classification.1} parent=0 // loop_header
    %s21 = sphi 0, %s25
    %p22 = scmp.ge.s32.totalorder %s21, 4
    %s31 = sphi 0, %s33
    %s34 = sphi 0, %s31
    %s35 = sphi 0, %s34
    %s51 = sphi 0, %s35
    %s55 = sphi 0, %s55
    %s57 = sphi 0, %s55
    %s58 = sphi 0, %s57
    %s72 = sphi 0, %s58
    %s76 = sphi 0, %s76
    %s78 = sphi 0, %s76
    %s79 = sphi 0, %s78
    %s93 = sphi 0, %s79
    %s97 = sphi 0, %s97
    %s99 = sphi 0, %s97
    %s100 = sphi 0, %s99
    %s114 = sphi 0, %s100
    %s118 = sphi 0, %s118
    %s120 = sphi 0, %s118
    %s121 = sphi 0, %s120
    %s135 = sphi 0, %s121
    %s139 = sphi 0, %s139
    %s141 = sphi 0, %s139
    %s142 = sphi 0, %s141
    %s156 = sphi 0, %s142
    %s160 = sphi 0, %s160
    %s162 = sphi 0, %s160
    %s163 = sphi 0, %s162
    %s177 = sphi 0, %s163
    %s181 = sphi 0, %s181
    %s183 = sphi 0, %s181
    %s184 = sphi 0, %s183
    %s198 = sphi 0, %s184
    %s202 = sphi 0, %s202
    %s204 = sphi 0, %s202
    %s205 = sphi 0, %s204
    %s219 = sphi 0, %s205
    %s223 = sphi 0, %s223
    %s225 = sphi 0, %s223
    %s226 = sphi 0, %s225
    %s240 = sphi 0, %s226
    %s244 = sphi 0, %s244
    %s246 = sphi 0, %s244
    %s247 = sphi 0, %s246
    %s261 = sphi 0, %s247
    %s265 = sphi 0, %s265
    %s267 = sphi 0, %s265
    %s268 = sphi 0, %s267
    %s282 = sphi 0, %s268
    %s286 = sphi 0, %s286
    %s288 = sphi 0, %s286
    %s289 = sphi 0, %s288
    %s303 = sphi 0, %s289
    %s307 = sphi 0, %s307
    %s309 = sphi 0, %s307
    %s310 = sphi 0, %s309
    %s324 = sphi 0, %s310
    %s328 = sphi 0, %s328
    %s330 = sphi 0, %s328
    %s331 = sphi 0, %s330
    %s345 = sphi 0, %s331
    %s351 = sphi 0, %s353
    %s354 = sphi 0, %s351
    %s355 = sphi 0, %s354
    %s371 = sphi 0, %s355
  $region4: #{dfast_for_classification.1} parent=0 // loop_header_branch
    %24 = sbr.rel (%p22) target = $region8
  $region5: #{dfast_for_classification.1} parent=0 // loop_body
    %s26 = ssub.s32 %s21, 1
    %s27 = ssub.s32 %s21, 2
    %s28 = sadd.s32 %s21, 1
    %s29 = ssub.s32 %s21, %s28
    %p30 = scmp.eq.s32.totalorder %s29, 0
    %s32 = sadd.s32 %s31, 1
    %s33 = scalar_select %p30, %s31, %s32
    %p36 = pneg %p30
    %p37 = scmp.eq.s32.totalorder %s21, 1
    %p38 = por %p36, %p37
    %p39 = scmp.ne.s32.totalorder %s31, %s34
    %p40 = scmp.eq.s32.totalorder %s21, 0
    %p41 = por %p39, %p40
    %p42 = scmp.ne.s32.totalorder %s31, %s34
    %p43 = scmp.eq.s32.totalorder %s26, 1
    %p44 = por %p42, %p43
    %p45 = scmp.ne.s32.totalorder %s34, %s35
    %p46 = scmp.eq.s32.totalorder %s26, 0
    %p47 = por %p45, %p46
    %p48 = scmp.ne.s32.totalorder %s34, %s35
    %p49 = scmp.eq.s32.totalorder %s27, 1
    %p50 = por %p48, %p49
    %p52 = scmp.ne.s32.totalorder %s35, %s51
    %p53 = scmp.eq.s32.totalorder %s27, 0
    %p54 = por %p52, %p53
    %s56 = sadd.s32 %s55, 1
    %p59 = scmp.eq.s32.totalorder %s21, 1
    %p60 = scmp.ne.s32.totalorder %s55, %s57
    %p61 = scmp.eq.s32.totalorder %s21, 0
    %p62 = por %p60, %p61
    %p63 = scmp.ne.s32.totalorder %s55, %s57
    %p64 = scmp.eq.s32.totalorder %s26, 1
    %p65 = por %p63, %p64
    %p66 = scmp.ne.s32.totalorder %s57, %s58
    %p67 = scmp.eq.s32.totalorder %s26, 0
    %p68 = por %p66, %p67
    %p69 = scmp.ne.s32.totalorder %s57, %s58
    %p70 = scmp.eq.s32.totalorder %s27, 1
    %p71 = por %p69, %p70
    %p73 = scmp.ne.s32.totalorder %s58, %s72
    %p74 = scmp.eq.s32.totalorder %s27, 0
    %p75 = por %p73, %p74
    %s77 = sadd.s32 %s76, 1
    %p80 = scmp.eq.s32.totalorder %s21, 1
    %p81 = scmp.ne.s32.totalorder %s76, %s78
    %p82 = scmp.eq.s32.totalorder %s21, 0
    %p83 = por %p81, %p82
    %p84 = scmp.ne.s32.totalorder %s76, %s78
    %p85 = scmp.eq.s32.totalorder %s26, 1
    %p86 = por %p84, %p85
    %p87 = scmp.ne.s32.totalorder %s78, %s79
    %p88 = scmp.eq.s32.totalorder %s26, 0
    %p89 = por %p87, %p88
    %p90 = scmp.ne.s32.totalorder %s78, %s79
    %p91 = scmp.eq.s32.totalorder %s27, 1
    %p92 = por %p90, %p91
    %p94 = scmp.ne.s32.totalorder %s79, %s93
    %p95 = scmp.eq.s32.totalorder %s27, 0
    %p96 = por %p94, %p95
    %s98 = sadd.s32 %s97, 1
    %p101 = scmp.eq.s32.totalorder %s21, 1
    %p102 = scmp.ne.s32.totalorder %s97, %s99
    %p103 = scmp.eq.s32.totalorder %s21, 0
    %p104 = por %p102, %p103
    %p105 = scmp.ne.s32.totalorder %s97, %s99
    %p106 = scmp.eq.s32.totalorder %s26, 1
    %p107 = por %p105, %p106
    %p108 = scmp.ne.s32.totalorder %s99, %s100
    %p109 = scmp.eq.s32.totalorder %s26, 0
    %p110 = por %p108, %p109
    %p111 = scmp.ne.s32.totalorder %s99, %s100
    %p112 = scmp.eq.s32.totalorder %s27, 1
    %p113 = por %p111, %p112
    %p115 = scmp.ne.s32.totalorder %s100, %s114
    %p116 = scmp.eq.s32.totalorder %s27, 0
    %p117 = por %p115, %p116
    %s119 = sadd.s32 %s118, 1
    %p122 = scmp.eq.s32.totalorder %s21, 1
    %p123 = scmp.ne.s32.totalorder %s118, %s120
    %p124 = scmp.eq.s32.totalorder %s21, 0
    %p125 = por %p123, %p124
    %p126 = scmp.ne.s32.totalorder %s118, %s120
    %p127 = scmp.eq.s32.totalorder %s26, 1
    %p128 = por %p126, %p127
    %p129 = scmp.ne.s32.totalorder %s120, %s121
    %p130 = scmp.eq.s32.totalorder %s26, 0
    %p131 = por %p129, %p130
    %p132 = scmp.ne.s32.totalorder %s120, %s121
    %p133 = scmp.eq.s32.totalorder %s27, 1
    %p134 = por %p132, %p133
    %p136 = scmp.ne.s32.totalorder %s121, %s135
    %p137 = scmp.eq.s32.totalorder %s27, 0
    %p138 = por %p136, %p137
    %s140 = sadd.s32 %s139, 1
    %p143 = scmp.eq.s32.totalorder %s21, 1
    %p144 = scmp.ne.s32.totalorder %s139, %s141
    %p145 = scmp.eq.s32.totalorder %s21, 0
    %p146 = por %p144, %p145
    %p147 = scmp.ne.s32.totalorder %s139, %s141
    %p148 = scmp.eq.s32.totalorder %s26, 1
    %p149 = por %p147, %p148
    %p150 = scmp.ne.s32.totalorder %s141, %s142
    %p151 = scmp.eq.s32.totalorder %s26, 0
    %p152 = por %p150, %p151
    %p153 = scmp.ne.s32.totalorder %s141, %s142
    %p154 = scmp.eq.s32.totalorder %s27, 1
    %p155 = por %p153, %p154
    %p157 = scmp.ne.s32.totalorder %s142, %s156
    %p158 = scmp.eq.s32.totalorder %s27, 0
    %p159 = por %p157, %p158
    %s161 = sadd.s32 %s160, 1
    %p164 = scmp.eq.s32.totalorder %s21, 1
    %p165 = scmp.ne.s32.totalorder %s160, %s162
    %p166 = scmp.eq.s32.totalorder %s21, 0
    %p167 = por %p165, %p166
    %p168 = scmp.ne.s32.totalorder %s160, %s162
    %p169 = scmp.eq.s32.totalorder %s26, 1
    %p170 = por %p168, %p169
    %p171 = scmp.ne.s32.totalorder %s162, %s163
    %p172 = scmp.eq.s32.totalorder %s26, 0
    %p173 = por %p171, %p172
    %p174 = scmp.ne.s32.totalorder %s162, %s163
    %p175 = scmp.eq.s32.totalorder %s27, 1
    %p176 = por %p174, %p175
    %p178 = scmp.ne.s32.totalorder %s163, %s177
    %p179 = scmp.eq.s32.totalorder %s27, 0
    %p180 = por %p178, %p179
    %s182 = sadd.s32 %s181, 1
    %p185 = scmp.eq.s32.totalorder %s21, 1
    %p186 = scmp.ne.s32.totalorder %s181, %s183
    %p187 = scmp.eq.s32.totalorder %s21, 0
    %p188 = por %p186, %p187
    %p189 = scmp.ne.s32.totalorder %s181, %s183
    %p190 = scmp.eq.s32.totalorder %s26, 1
    %p191 = por %p189, %p190
    %p192 = scmp.ne.s32.totalorder %s183, %s184
    %p193 = scmp.eq.s32.totalorder %s26, 0
    %p194 = por %p192, %p193
    %p195 = scmp.ne.s32.totalorder %s183, %s184
    %p196 = scmp.eq.s32.totalorder %s27, 1
    %p197 = por %p195, %p196
    %p199 = scmp.ne.s32.totalorder %s184, %s198
    %p200 = scmp.eq.s32.totalorder %s27, 0
    %p201 = por %p199, %p200
    %s203 = sadd.s32 %s202, 1
    %p206 = scmp.eq.s32.totalorder %s21, 1
    %p207 = scmp.ne.s32.totalorder %s202, %s204
    %p208 = scmp.eq.s32.totalorder %s21, 0
    %p209 = por %p207, %p208
    %p210 = scmp.ne.s32.totalorder %s202, %s204
    %p211 = scmp.eq.s32.totalorder %s26, 1
    %p212 = por %p210, %p211
    %p213 = scmp.ne.s32.totalorder %s204, %s205
    %p214 = scmp.eq.s32.totalorder %s26, 0
    %p215 = por %p213, %p214
    %p216 = scmp.ne.s32.totalorder %s204, %s205
    %p217 = scmp.eq.s32.totalorder %s27, 1
    %p218 = por %p216, %p217
    %p220 = scmp.ne.s32.totalorder %s205, %s219
    %p221 = scmp.eq.s32.totalorder %s27, 0
    %p222 = por %p220, %p221
    %s224 = sadd.s32 %s223, 1
    %p227 = scmp.eq.s32.totalorder %s21, 1
    %p228 = scmp.ne.s32.totalorder %s223, %s225
    %p229 = scmp.eq.s32.totalorder %s21, 0
    %p230 = por %p228, %p229
    %p231 = scmp.ne.s32.totalorder %s223, %s225
    %p232 = scmp.eq.s32.totalorder %s26, 1
    %p233 = por %p231, %p232
    %p234 = scmp.ne.s32.totalorder %s225, %s226
    %p235 = scmp.eq.s32.totalorder %s26, 0
    %p236 = por %p234, %p235
    %p237 = scmp.ne.s32.totalorder %s225, %s226
    %p238 = scmp.eq.s32.totalorder %s27, 1
    %p239 = por %p237, %p238
    %p241 = scmp.ne.s32.totalorder %s226, %s240
    %p242 = scmp.eq.s32.totalorder %s27, 0
    %p243 = por %p241, %p242
    %s245 = sadd.s32 %s244, 1
    %p248 = scmp.eq.s32.totalorder %s21, 1
    %p249 = scmp.ne.s32.totalorder %s244, %s246
    %p250 = scmp.eq.s32.totalorder %s21, 0
    %p251 = por %p249, %p250
    %p252 = scmp.ne.s32.totalorder %s244, %s246
    %p253 = scmp.eq.s32.totalorder %s26, 1
    %p254 = por %p252, %p253
    %p255 = scmp.ne.s32.totalorder %s246, %s247
    %p256 = scmp.eq.s32.totalorder %s26, 0
    %p257 = por %p255, %p256
    %p258 = scmp.ne.s32.totalorder %s246, %s247
    %p259 = scmp.eq.s32.totalorder %s27, 1
    %p260 = por %p258, %p259
    %p262 = scmp.ne.s32.totalorder %s247, %s261
    %p263 = scmp.eq.s32.totalorder %s27, 0
    %p264 = por %p262, %p263
    %s266 = sadd.s32 %s265, 1
    %p269 = scmp.eq.s32.totalorder %s21, 1
    %p270 = scmp.ne.s32.totalorder %s265, %s267
    %p271 = scmp.eq.s32.totalorder %s21, 0
    %p272 = por %p270, %p271
    %p273 = scmp.ne.s32.totalorder %s265, %s267
    %p274 = scmp.eq.s32.totalorder %s26, 1
    %p275 = por %p273, %p274
    %p276 = scmp.ne.s32.totalorder %s267, %s268
    %p277 = scmp.eq.s32.totalorder %s26, 0
    %p278 = por %p276, %p277
    %p279 = scmp.ne.s32.totalorder %s267, %s268
    %p280 = scmp.eq.s32.totalorder %s27, 1
    %p281 = por %p279, %p280
    %p283 = scmp.ne.s32.totalorder %s268, %s282
    %p284 = scmp.eq.s32.totalorder %s27, 0
    %p285 = por %p283, %p284
    %s287 = sadd.s32 %s286, 1
    %p290 = scmp.eq.s32.totalorder %s21, 1
    %p291 = scmp.ne.s32.totalorder %s286, %s288
    %p292 = scmp.eq.s32.totalorder %s21, 0
    %p293 = por %p291, %p292
    %p294 = scmp.ne.s32.totalorder %s286, %s288
    %p295 = scmp.eq.s32.totalorder %s26, 1
    %p296 = por %p294, %p295
    %p297 = scmp.ne.s32.totalorder %s288, %s289
    %p298 = scmp.eq.s32.totalorder %s26, 0
    %p299 = por %p297, %p298
    %p300 = scmp.ne.s32.totalorder %s288, %s289
    %p301 = scmp.eq.s32.totalorder %s27, 1
    %p302 = por %p300, %p301
    %p304 = scmp.ne.s32.totalorder %s289, %s303
    %p305 = scmp.eq.s32.totalorder %s27, 0
    %p306 = por %p304, %p305
    %s308 = sadd.s32 %s307, 1
    %p311 = scmp.eq.s32.totalorder %s21, 1
    %p312 = scmp.ne.s32.totalorder %s307, %s309
    %p313 = scmp.eq.s32.totalorder %s21, 0
    %p314 = por %p312, %p313
    %p315 = scmp.ne.s32.totalorder %s307, %s309
    %p316 = scmp.eq.s32.totalorder %s26, 1
    %p317 = por %p315, %p316
    %p318 = scmp.ne.s32.totalorder %s309, %s310
    %p319 = scmp.eq.s32.totalorder %s26, 0
    %p320 = por %p318, %p319
    %p321 = scmp.ne.s32.totalorder %s309, %s310
    %p322 = scmp.eq.s32.totalorder %s27, 1
    %p323 = por %p321, %p322
    %p325 = scmp.ne.s32.totalorder %s310, %s324
    %p326 = scmp.eq.s32.totalorder %s27, 0
    %p327 = por %p325, %p326
    %s329 = sadd.s32 %s328, 1
    %p332 = scmp.eq.s32.totalorder %s21, 1
    %p333 = scmp.ne.s32.totalorder %s328, %s330
    %p334 = scmp.eq.s32.totalorder %s21, 0
    %p335 = por %p333, %p334
    %p336 = scmp.ne.s32.totalorder %s328, %s330
    %p337 = scmp.eq.s32.totalorder %s26, 1
    %p338 = por %p336, %p337
    %p339 = scmp.ne.s32.totalorder %s330, %s331
    %p340 = scmp.eq.s32.totalorder %s26, 0
    %p341 = por %p339, %p340
    %p342 = scmp.ne.s32.totalorder %s330, %s331
    %p343 = scmp.eq.s32.totalorder %s27, 1
    %p344 = por %p342, %p343
    %p346 = scmp.ne.s32.totalorder %s331, %s345
    %p347 = scmp.eq.s32.totalorder %s27, 0
    %p348 = por %p346, %p347
    %s349 = ssub.s32 %s21, %s28
    %p350 = scmp.eq.s32.totalorder %s349, 0
    %s352 = sadd.s32 %s351, 1
    %s353 = scalar_select %p350, %s351, %s352
    %p356 = pneg %p350
    %p357 = scmp.eq.s32.totalorder %s21, 1
    %p358 = por %p356, %p357
    %p359 = scmp.ne.s32.totalorder %s351, %s354
    %p360 = scmp.eq.s32.totalorder %s21, 0
    %p361 = por %p359, %p360
    %p362 = scmp.ne.s32.totalorder %s351, %s354
    %p363 = scmp.eq.s32.totalorder %s26, 1
    %p364 = por %p362, %p363
    %p365 = scmp.ne.s32.totalorder %s354, %s355
    %p366 = scmp.eq.s32.totalorder %s26, 0
    %p367 = por %p365, %p366
    %p368 = scmp.ne.s32.totalorder %s354, %s355
    %p369 = scmp.eq.s32.totalorder %s27, 1
    %p370 = por %p368, %p369
    %p372 = scmp.ne.s32.totalorder %s355, %s371
    %p373 = scmp.eq.s32.totalorder %s27, 0
    %p374 = por %p372, %p373
    %p375 = scmp.le.s32.totalorder 1, %s21
    %p376 = scmp.lt.s32.totalorder %s21, 3
    %p377 = pnand %p375, %p376
    %p378 = pneg %p377
    // Predicated region
    $region9: #{dfast_for_classification.1} parent=5 // pred_check
      _
    $region10: #{dfast_for_classification.1} parent=5 // pred_check_branch
      %380 = sbr.rel (%p377) target = $region12
    $region11: #{dfast_for_classification.1} parent=5 // pred_region
      %s381 = ssub.s32 %s21, 1
      // Predicated region
      $region13: #{dfast_for_classification.1} parent=11 // pred_check
        %p382 = pneg %p68
      $region14: #{dfast_for_classification.1} parent=11 // pred_check_branch
        %384 = sbr.rel (%p382) target = $region16
      $region15: #{dfast_for_classification.1} parent=11 // pred_region
        _
      $region16: #{dfast_for_classification.1} parent=11 // pred_fallthru
        _
      // Predicated region
      $region17: #{dfast_for_classification.1} parent=11 // pred_check
        %p385 = pneg %p89
      $region18: #{dfast_for_classification.1} parent=11 // pred_check_branch
        %387 = sbr.rel (%p385) target = $region20
      $region19: #{dfast_for_classification.1} parent=11 // pred_region
        _
      $region20: #{dfast_for_classification.1} parent=11 // pred_fallthru
        _
      // Predicated region
      $region21: #{dfast_for_classification.1} parent=11 // pred_check
        %p388 = pneg %p110
      $region22: #{dfast_for_classification.1} parent=11 // pred_check_branch
        %390 = sbr.rel (%p388) target = $region24
      $region23: #{dfast_for_classification.1} parent=11 // pred_region
        _
      $region24: #{dfast_for_classification.1} parent=11 // pred_fallthru
        _
      // Predicated region
      $region25: #{dfast_for_classification.1} parent=11 // pred_check
        %p391 = pneg %p131
      $region26: #{dfast_for_classification.1} parent=11 // pred_check_branch
        %393 = sbr.rel (%p391) target = $region28
      $region27: #{dfast_for_classification.1} parent=11 // pred_region
        _
      $region28: #{dfast_for_classification.1} parent=11 // pred_fallthru
        _
      // Predicated region
      $region29: #{dfast_for_classification.1} parent=11 // pred_check
        %p394 = pneg %p152
      $region30: #{dfast_for_classification.1} parent=11 // pred_check_branch
        %396 = sbr.rel (%p394) target = $region32
      $region31: #{dfast_for_classification.1} parent=11 // pred_region
        _
      $region32: #{dfast_for_classification.1} parent=11 // pred_fallthru
        _
      // Predicated region
      $region33: #{dfast_for_classification.1} parent=11 // pred_check
        %p397 = pneg %p173
      $region34: #{dfast_for_classification.1} parent=11 // pred_check_branch
        %399 = sbr.rel (%p397) target = $region36
      $region35: #{dfast_for_classification.1} parent=11 // pred_region
        _
      $region36: #{dfast_for_classification.1} parent=11 // pred_fallthru
        _
      // Predicated region
      $region37: #{dfast_for_classification.1} parent=11 // pred_check
        %p400 = pneg %p194
      $region38: #{dfast_for_classification.1} parent=11 // pred_check_branch
        %402 = sbr.rel (%p400) target = $region40
      $region39: #{dfast_for_classification.1} parent=11 // pred_region
        _
      $region40: #{dfast_for_classification.1} parent=11 // pred_fallthru
        _
      // Predicated region
      $region41: #{dfast_for_classification.1} parent=11 // pred_check
        %p403 = pneg %p215
      $region42: #{dfast_for_classification.1} parent=11 // pred_check_branch
        %405 = sbr.rel (%p403) target = $region44
      $region43: #{dfast_for_classification.1} parent=11 // pred_region
        _
      $region44: #{dfast_for_classification.1} parent=11 // pred_fallthru
        _
      // Predicated region
      $region45: #{dfast_for_classification.1} parent=11 // pred_check
        %p406 = pneg %p236
      $region46: #{dfast_for_classification.1} parent=11 // pred_check_branch
        %408 = sbr.rel (%p406) target = $region48
      $region47: #{dfast_for_classification.1} parent=11 // pred_region
        _
      $region48: #{dfast_for_classification.1} parent=11 // pred_fallthru
        _
      // Predicated region
      $region49: #{dfast_for_classification.1} parent=11 // pred_check
        %p409 = pneg %p257
      $region50: #{dfast_for_classification.1} parent=11 // pred_check_branch
        %411 = sbr.rel (%p409) target = $region52
      $region51: #{dfast_for_classification.1} parent=11 // pred_region
        _
      $region52: #{dfast_for_classification.1} parent=11 // pred_fallthru
        _
      // Predicated region
      $region53: #{dfast_for_classification.1} parent=11 // pred_check
        %p412 = pneg %p278
      $region54: #{dfast_for_classification.1} parent=11 // pred_check_branch
        %414 = sbr.rel (%p412) target = $region56
      $region55: #{dfast_for_classification.1} parent=11 // pred_region
        _
      $region56: #{dfast_for_classification.1} parent=11 // pred_fallthru
        _
      // Predicated region
      $region57: #{dfast_for_classification.1} parent=11 // pred_check
        %p415 = pneg %p299
      $region58: #{dfast_for_classification.1} parent=11 // pred_check_branch
        %417 = sbr.rel (%p415) target = $region60
      $region59: #{dfast_for_classification.1} parent=11 // pred_region
        _
      $region60: #{dfast_for_classification.1} parent=11 // pred_fallthru
        _
      // Predicated region
      $region61: #{dfast_for_classification.1} parent=11 // pred_check
        %p418 = pneg %p320
      $region62: #{dfast_for_classification.1} parent=11 // pred_check_branch
        %420 = sbr.rel (%p418) target = $region64
      $region63: #{dfast_for_classification.1} parent=11 // pred_region
        _
      $region64: #{dfast_for_classification.1} parent=11 // pred_fallthru
        _
      // Predicated region
      $region65: #{dfast_for_classification.1} parent=11 // pred_check
        %p421 = pneg %p341
      $region66: #{dfast_for_classification.1} parent=11 // pred_check_branch
        %423 = sbr.rel (%p421) target = $region68
      $region67: #{dfast_for_classification.1} parent=11 // pred_region
        _
      $region68: #{dfast_for_classification.1} parent=11 // pred_fallthru
        _
    $region12: #{dfast_for_classification.1} parent=5 // pred_fallthru
      _
    %p424 = scmp.lt.s32.totalorder %s21, 2
    // Predicated region
    $region69: #{dfast_for_classification.1} parent=5 // pred_check
      %p425 = pneg %p424
    $region70: #{dfast_for_classification.1} parent=5 // pred_check_branch
      %427 = sbr.rel (%p425) target = $region72
    $region71: #{dfast_for_classification.1} parent=5 // pred_region
      // Predicated region
      $region73: #{dfast_for_classification.1} parent=71 // pred_check
        %p428 = pneg %p41
      $region74: #{dfast_for_classification.1} parent=71 // pred_check_branch
        %430 = sbr.rel (%p428) target = $region76
      $region75: #{dfast_for_classification.1} parent=71 // pred_region
        %p431 = scmp.lt.s32.totalorder %s21, 1
        %s432 = scalar_select %p431, %s21, 1
        %s433 = smul.addr %s432, 8
        %s434 = scalar_lea.vmem %s0, %s433
      $region76: #{dfast_for_classification.1} parent=71 // pred_fallthru
        _
    $region72: #{dfast_for_classification.1} parent=5 // pred_fallthru
      _
    %p435 = scmp.le.s32.totalorder 1, %s21
    %p436 = scmp.lt.s32.totalorder %s21, 3
    %p437 = pnand %p435, %p436
    %p438 = pneg %p437
    // Predicated region
    $region77: #{dfast_for_classification.1} parent=5 // pred_check
      _
    $region78: #{dfast_for_classification.1} parent=5 // pred_check_branch
      %440 = sbr.rel (%p437) target = $region80
    $region79: #{dfast_for_classification.1} parent=5 // pred_region
      %s441 = ssub.s32 %s21, 1
      %p442 = scmp.lt.s32.totalorder %s26, 1
      %s443 = scalar_select %p442, %s26, 1
      %s444 = smul.addr %s443, 8
      %s445 = scalar_lea.vmem %s0, %s444
      %p446 = pneg %p47
      %p447 = pneg %p44
      %p448 = pneg %p68
      %p449 = pneg %p65
      %p450 = pneg %p89
      %p451 = pneg %p86
      %p452 = pneg %p110
      %p453 = pneg %p107
      %p454 = pneg %p131
      %p455 = pneg %p128
      %p456 = pneg %p152
      %p457 = pneg %p149
      %p458 = pneg %p173
      %p459 = pneg %p170
      %p460 = pneg %p194
      %p461 = pneg %p191
      %p462 = pneg %p215
      %p463 = pneg %p212
      %p464 = pneg %p236
      %p465 = pneg %p233
      %p466 = pneg %p257
      %p467 = pneg %p254
      %p468 = pneg %p278
      %p469 = pneg %p275
      %p470 = pneg %p299
      %p471 = pneg %p296
      %p472 = pneg %p320
      %p473 = pneg %p317
      %p474 = pneg %p341
      %p475 = pneg %p338
      %p476 = pneg %p367
      %p477 = pneg %p364
      %p478 = scmp.lt.s32.totalorder %s26, 1
      %s479 = scalar_select %p478, %s26, 1
      %s480 = scalar_lea.vmem %s15, %s479
      %p481 = scmp.lt.s32.totalorder %s26, 1
      %s482 = scalar_select %p481, %s26, 1
      %s483 = smul.addr %s482, 8
      %s484 = scalar_lea.vmem %s0, %s483
      %p485 = scmp.lt.s32.totalorder %s26, 1
      %s486 = scalar_select %p485, %s26, 1
      %s487 = scalar_lea.vmem %s15, %s486
      %v488 = vld [vmem:[%s484] sm:$0xff]
      %v489 = vlaneseq
      %v490 = vand.u32 %v489, 127
      %vm491 = vcmask 1048064
      %492 = vrot.lane.b32.xlu0 %v488, 64
      %v493 = vpop.permute.xlu0 %492
      %v494 = vsel %vm491, %v493, %v488
      %495 = vrot.lane.b32.xlu0 %v494, 64
      %v496 = vpop.permute.xlu0 %495
      %v497 = vsel %vm491, %v496, %v488
      %vm498 = vcmp.ge.s32.totalorder %v490, 3
      %500 = vrot.lane.b32.xlu0 %v497, 67
      %v501 = vpop.permute.xlu0 %500
      %v503 = vsel %vm498, %v501, 0.0
      %vm504 = vcmp.ge.s32.totalorder %v490, 2
      %505 = vrot.lane.b32.xlu0 %v497, 66
      %v506 = vpop.permute.xlu0 %505
      %v508 = vsel %vm504, %v506, 0.0
      %vm509 = vcmp.ge.s32.totalorder %v490, 1
      %510 = vrot.lane.b32.xlu0 %v497, 65
      %v511 = vpop.permute.xlu0 %510
      %v513 = vsel %vm509, %v511, 0.0
      %vm514 = vcmp.lt.s32.totalorder %v490, 63
      %515 = vrot.lane.b32.xlu0 %v497, 127
      %v516 = vpop.permute.xlu0 %515
      %v518 = vsel %vm514, %v516, 0.0
      %vm519 = vcmp.lt.s32.totalorder %v490, 62
      %520 = vrot.lane.b32.xlu0 %v497, 126
      %v521 = vpop.permute.xlu0 %520
      %v523 = vsel %vm519, %v521, 0.0
      %vm524 = vcmp.lt.s32.totalorder %v490, 61
      %525 = vrot.lane.b32.xlu0 %v497, 125
      %v526 = vpop.permute.xlu0 %525
      %v528 = vsel %vm524, %v526, 0.0
      %v529 = vld [vmem:[%s1] sm:$0xff]
      %v530 = vld [vmem:[%s1 + $0x8] sm:$0x7f]
      %vm531 = vcmask 457728
      %v533 = vsel %vm531, %v529, 0
      %v536 = vsel %vm531, %v530, 0
      %538 = vmatprep.subr.mxu0 0.0
      %539 = vmatpush1.msra.mxu0 %v503
      %540 = vmatprep.subr.mxu0 0.0
      %541 = vmatpush1.msra.mxu0 %v508
      %542 = vmatprep.subr.mxu0 0.0
      %543 = vmatpush1.msra.mxu0 %v513
      %544 = vmatprep.subr.mxu0 0.0
      %545 = vmatpush1.msra.mxu0 %v488
      %546 = vmatprep.subr.mxu0 0.0
      %547 = vmatpush1.msra.mxu0 %v518
      %548 = vmatprep.subr.mxu0 0.0
      %549 = vmatpush1.msra.mxu0 %v523
      %550 = vmatprep.subr.mxu0 0.0
      %551 = vmatpush1.msra.mxu0 %v528
      %552 = vmatprep.subr.mxu0 0.0
      %553 = vmatpush1.msra.mxu0 0.0
      %554 = vmatprep.subr.mxu0 0.0
      %555 = vmatpush1.msra.mxu0 0.0
      %556 = vmatprep.subr.mxu0 0.0
      %557 = vmatpush1.msra.mxu0 0.0
      %558 = vmatprep.subr.mxu0 0.0
      %559 = vmatpush1.msra.mxu0 0.0
      %560 = vmatprep.subr.mxu0 0.0
      %561 = vmatpush1.msra.mxu0 0.0
      %562 = vmatprep.subr.mxu0 0.0
      %563 = vmatpush1.msra.mxu0 0.0
      %564 = vmatprep.subr.mxu0 0.0
      %565 = vmatpush1.msra.mxu0 0.0
      %566 = vmatprep.subr.mxu0 0.0
      %567 = vmatpush1.msra.mxu0 0.0
      %568 = vmatprep.subr.mxu0 0.0
      %569 = vmatpush1.msra.mxu0 0.0
      %570 = vmatprep.subr.mxu0 0.0
      %571 = vmatpush1.msra.mxu0 0.0
      %572 = vmatprep.subr.mxu0 0.0
      %573 = vmatpush1.msra.mxu0 0.0
      %574 = vmatprep.subr.mxu0 0.0
      %575 = vmatpush1.msra.mxu0 0.0
      %576 = vmatprep.subr.mxu0 0.0
      %577 = vmatpush1.msra.mxu0 0.0
      %578 = vmatprep.subr.mxu0 0.0
      %579 = vmatpush1.msra.mxu0 0.0
      %580 = vmatprep.subr.mxu0 0.0
      %581 = vmatpush1.msra.mxu0 0.0
      %582 = vmatprep.subr.mxu0 0.0
      %583 = vmatpush1.msra.mxu0 0.0
      %584 = vmatprep.subr.mxu0 0.0
      %585 = vmatpush1.msra.mxu0 0.0
      %586 = vmatprep.subr.mxu0 0.0
      %587 = vmatpush1.msra.mxu0 0.0
      %588 = vmatprep.subr.mxu0 0.0
      %589 = vmatpush1.msra.mxu0 0.0
      %590 = vmatprep.subr.mxu0 0.0
      %591 = vmatpush1.msra.mxu0 0.0
      %592 = vmatprep.subr.mxu0 0.0
      %593 = vmatpush1.msra.mxu0 0.0
      %594 = vmatprep.subr.mxu0 0.0
      %595 = vmatpush1.msra.mxu0 0.0
      %596 = vmatprep.subr.mxu0 0.0
      %597 = vmatpush1.msra.mxu0 0.0
      %598 = vmatprep.subr.mxu0 0.0
      %599 = vmatpush1.msra.mxu0 0.0
      %600 = vmatprep.subr.mxu0 0.0
      %601 = vmatpush1.msra.mxu0 0.0
      %602 = vmatprep.mubr.f32.mxu0 0.0
      %603 = vmatmul.mubr.f32.gmra.mrb[0].mxu0 %v533
      %v604 = vpop.f32.mrb[0].mxu0
      %v605 = vadd.f32 0.0, %v604
      %v606 = vpop.f32.mrb[0].mxu0
      %607 = vmatprep.mubr.f32.mxu0 0.0
      %608 = vmatmul.mubr.f32.gmra.mrb[0].mxu0 %v536
      %v609 = vpop.f32.mrb[0].mxu0
      %v610 = vadd.f32 0.0, %v609
      %v611 = vpop.f32.mrb[0].mxu0
      %612 = vdwg.mxu0
      %v613 = vmul.f32 %v605, 0.5
      %v614 = vmul.f32 %v610, 0.5
      %v615 = vmul.f32 %v605, 0.044715
      %v616 = vmul.f32 %v610, 0.044715
      %v617 = vmul.f32 %v615, %v605
      %v618 = vmul.f32 %v616, %v610
      %v619 = vmul.f32 %v617, %v605
      %v620 = vmul.f32 %v618, %v610
      %v621 = vadd.f32 %v605, %v619
      %v622 = vadd.f32 %v610, %v620
      %v623 = vmul.f32 %v621, 0.7978846
      %v624 = vmul.f32 %v622, 0.7978846
      %v625 = vtanh.pop %v623
      %v626 = vtanh.pop %v624
      %v627 = vadd.f32 %v625, 1.0
      %v628 = vadd.f32 %v626, 1.0
      %v629 = vmul.f32 %v613, %v627
      %v630 = vmul.f32 %v614, %v628
      %vm631 = vcmask 523264
      %v633 = vsel %vm631, %v488, 0
      %635 = vmatprep.subr.mxu0 0.0
      %636 = vmatpush1.xpose.msra.mxu0 %v633
      %637 = vmatprep.subr.mxu0 0.0
      %638 = vmatpush1.xpose.msra.mxu0 0.0
      %639 = vmatprep.subr.mxu0 0.0
      %640 = vmatpush1.xpose.msra.mxu0 0.0
      %641 = vmatprep.subr.mxu0 0.0
      %642 = vmatpush1.xpose.msra.mxu0 0.0
      %643 = vmatprep.subr.mxu0 0.0
      %644 = vmatpush1.xpose.msra.mxu0 0.0
      %645 = vmatprep.subr.mxu0 0.0
      %646 = vmatpush1.xpose.msra.mxu0 0.0
      %647 = vmatprep.subr.mxu0 0.0
      %648 = vmatpush1.xpose.msra.mxu0 0.0
      %649 = vmatprep.subr.mxu0 0.0
      %650 = vmatpush1.xpose.msra.mxu0 0.0
      %651 = vmatprep.subr.mxu0 0.0
      %652 = vmatpush1.xpose.msra.mxu0 0.0
      %653 = vmatprep.subr.mxu0 0.0
      %654 = vmatpush1.xpose.msra.mxu0 0.0
      %655 = vmatprep.subr.mxu0 0.0
      %656 = vmatpush1.xpose.msra.mxu0 0.0
      %657 = vmatprep.subr.mxu0 0.0
      %658 = vmatpush1.xpose.msra.mxu0 0.0
      %659 = vmatprep.subr.mxu0 0.0
      %660 = vmatpush1.xpose.msra.mxu0 0.0
      %661 = vmatprep.subr.mxu0 0.0
      %662 = vmatpush1.xpose.msra.mxu0 0.0
      %663 = vmatprep.subr.mxu0 0.0
      %664 = vmatpush1.xpose.msra.mxu0 0.0
      %665 = vmatprep.subr.mxu0 0.0
      %666 = vmatpush1.xpose.msra.mxu0 0.0
      %667 = vmatprep.subr.mxu0 0.0
      %668 = vmatpush1.xpose.msra.mxu0 0.0
      %669 = vmatprep.subr.mxu0 0.0
      %670 = vmatpush1.xpose.msra.mxu0 0.0
      %671 = vmatprep.subr.mxu0 0.0
      %672 = vmatpush1.xpose.msra.mxu0 0.0
      %673 = vmatprep.subr.mxu0 0.0
      %674 = vmatpush1.xpose.msra.mxu0 0.0
      %675 = vmatprep.subr.mxu0 0.0
      %676 = vmatpush1.xpose.msra.mxu0 0.0
      %677 = vmatprep.subr.mxu0 0.0
      %678 = vmatpush1.xpose.msra.mxu0 0.0
      %679 = vmatprep.subr.mxu0 0.0
      %680 = vmatpush1.xpose.msra.mxu0 0.0
      %681 = vmatprep.subr.mxu0 0.0
      %682 = vmatpush1.xpose.msra.mxu0 0.0
      %683 = vmatprep.subr.mxu0 0.0
      %684 = vmatpush1.xpose.msra.mxu0 0.0
      %685 = vmatprep.subr.mxu0 0.0
      %686 = vmatpush1.xpose.msra.mxu0 0.0
      %687 = vmatprep.subr.mxu0 0.0
      %688 = vmatpush1.xpose.msra.mxu0 0.0
      %689 = vmatprep.subr.mxu0 0.0
      %690 = vmatpush1.xpose.msra.mxu0 0.0
      %691 = vmatprep.subr.mxu0 0.0
      %692 = vmatpush1.xpose.msra.mxu0 0.0
      %693 = vmatprep.subr.mxu0 0.0
      %694 = vmatpush1.xpose.msra.mxu0 0.0
      %695 = vmatprep.subr.mxu0 0.0
      %696 = vmatpush1.xpose.msra.mxu0 0.0
      %697 = vmatprep.subr.mxu0 0.0
      %698 = vmatpush1.xpose.msra.mxu0 0.0
      %699 = vmatprep.mubr.f32.mxu0 0.0
      %700 = vmatmul.mubr.f32.gmra.mrb[0].mxu0 %v633
      %v701 = vpop.f32.mrb[0].mxu0
      %v702 = vadd.f32 0.0, %v701
      %v703 = vpop.f32.mrb[0].mxu0
      %704 = vdwg.mxu0
      %v705 = vmul.f32 %v702, 0.125
      %vm706 = vcmask 64512
      %v707 = vsel %vm706, %v705, -inf
      %708 = vmax.xlane.f32.xlu0 %v707
      %v709 = vpop.xlane.xlu0 %708
      %v710 = vsub.f32 %v705, %v709
      %v711 = vmul.f32 %v710, 1.442695
      %v712 = vpow.pop %v711
      %v713 = vsel %vm706, %v712, 0.0
      %714 = vadd.xlane.f32.xlu0 %v713
      %v715 = vpop.xlane.xlu0 %714
      %v716 = vrcp.pop %v715
      %v717 = vmul.f32 %v712, %v716
      %v719 = vsel %vm706, %v717, 0
      %721 = vmatprep.subr.mxu0 0.0
      %722 = vmatpush1.msra.mxu0 %v488
      %723 = vmatprep.subr.mxu0 0.0
      %724 = vmatpush1.msra.mxu0 0.0
      %725 = vmatprep.subr.mxu0 0.0
      %726 = vmatpush1.msra.mxu0 0.0
      %727 = vmatprep.subr.mxu0 0.0
      %728 = vmatpush1.msra.mxu0 0.0
      %729 = vmatprep.subr.mxu0 0.0
      %730 = vmatpush1.msra.mxu0 0.0
      %731 = vmatprep.subr.mxu0 0.0
      %732 = vmatpush1.msra.mxu0 0.0
      %733 = vmatprep.subr.mxu0 0.0
      %734 = vmatpush1.msra.mxu0 0.0
      %735 = vmatprep.subr.mxu0 0.0
      %736 = vmatpush1.msra.mxu0 0.0
      %737 = vmatprep.subr.mxu0 0.0
      %738 = vmatpush1.msra.mxu0 0.0
      %739 = vmatprep.subr.mxu0 0.0
      %740 = vmatpush1.msra.mxu0 0.0
      %741 = vmatprep.subr.mxu0 0.0
      %742 = vmatpush1.msra.mxu0 0.0
      %743 = vmatprep.subr.mxu0 0.0
      %744 = vmatpush1.msra.mxu0 0.0
      %745 = vmatprep.subr.mxu0 0.0
      %746 = vmatpush1.msra.mxu0 0.0
      %747 = vmatprep.subr.mxu0 0.0
      %748 = vmatpush1.msra.mxu0 0.0
      %749 = vmatprep.subr.mxu0 0.0
      %750 = vmatpush1.msra.mxu0 0.0
      %751 = vmatprep.subr.mxu0 0.0
      %752 = vmatpush1.msra.mxu0 0.0
      %753 = vmatprep.subr.mxu0 0.0
      %754 = vmatpush1.msra.mxu0 0.0
      %755 = vmatprep.subr.mxu0 0.0
      %756 = vmatpush1.msra.mxu0 0.0
      %757 = vmatprep.subr.mxu0 0.0
      %758 = vmatpush1.msra.mxu0 0.0
      %759 = vmatprep.subr.mxu0 0.0
      %760 = vmatpush1.msra.mxu0 0.0
      %761 = vmatprep.subr.mxu0 0.0
      %762 = vmatpush1.msra.mxu0 0.0
      %763 = vmatprep.subr.mxu0 0.0
      %764 = vmatpush1.msra.mxu0 0.0
      %765 = vmatprep.subr.mxu0 0.0
      %766 = vmatpush1.msra.mxu0 0.0
      %767 = vmatprep.subr.mxu0 0.0
      %768 = vmatpush1.msra.mxu0 0.0
      %769 = vmatprep.subr.mxu0 0.0
      %770 = vmatpush1.msra.mxu0 0.0
      %771 = vmatprep.subr.mxu0 0.0
      %772 = vmatpush1.msra.mxu0 0.0
      %773 = vmatprep.subr.mxu0 0.0
      %774 = vmatpush1.msra.mxu0 0.0
      %775 = vmatprep.subr.mxu0 0.0
      %776 = vmatpush1.msra.mxu0 0.0
      %777 = vmatprep.subr.mxu0 0.0
      %778 = vmatpush1.msra.mxu0 0.0
      %779 = vmatprep.subr.mxu0 0.0
      %780 = vmatpush1.msra.mxu0 0.0
      %781 = vmatprep.subr.mxu0 0.0
      %782 = vmatpush1.msra.mxu0 0.0
      %783 = vmatprep.subr.mxu0 0.0
      %784 = vmatpush1.msra.mxu0 0.0
      %785 = vmatprep.mubr.f32.mxu0 0.0
      %786 = vmatmul.mubr.f32.gmra.mrb[0].mxu0 %v719
      %v787 = vpop.f32.mrb[0].mxu0
      %v788 = vadd.f32 0.0, %v787
      %v789 = vpop.f32.mrb[0].mxu0
      %790 = vdwg.mxu0
      %v791 = vld [vmem:[%s2] sm:$0xff]
      %v792 = vld [vmem:[%s2 + $0x8] sm:$0x7f]
      %v794 = vsel %vm706, %v791, 0
      %v797 = vsel %vm706, %v792, 0
      %799 = vmatprep.subr.mxu0 0.0
      %800 = vmatpush1.msra.mxu0 %v788
      %801 = vmatprep.subr.mxu0 0.0
      %802 = vmatpush1.msra.mxu0 0.0
      %803 = vmatprep.subr.mxu0 0.0
      %804 = vmatpush1.msra.mxu0 0.0
      %805 = vmatprep.subr.mxu0 0.0
      %806 = vmatpush1.msra.mxu0 0.0
      %807 = vmatprep.subr.mxu0 0.0
      %808 = vmatpush1.msra.mxu0 0.0
      %809 = vmatprep.subr.mxu0 0.0
      %810 = vmatpush1.msra.mxu0 0.0
      %811 = vmatprep.subr.mxu0 0.0
      %812 = vmatpush1.msra.mxu0 0.0
      %813 = vmatprep.subr.mxu0 0.0
      %814 = vmatpush1.msra.mxu0 0.0
      %815 = vmatprep.subr.mxu0 0.0
      %816 = vmatpush1.msra.mxu0 0.0
      %817 = vmatprep.subr.mxu0 0.0
      %818 = vmatpush1.msra.mxu0 0.0
      %819 = vmatprep.subr.mxu0 0.0
      %820 = vmatpush1.msra.mxu0 0.0
      %821 = vmatprep.subr.mxu0 0.0
      %822 = vmatpush1.msra.mxu0 0.0
      %823 = vmatprep.subr.mxu0 0.0
      %824 = vmatpush1.msra.mxu0 0.0
      %825 = vmatprep.subr.mxu0 0.0
      %826 = vmatpush1.msra.mxu0 0.0
      %827 = vmatprep.subr.mxu0 0.0
      %828 = vmatpush1.msra.mxu0 0.0
      %829 = vmatprep.subr.mxu0 0.0
      %830 = vmatpush1.msra.mxu0 0.0
      %831 = vmatprep.subr.mxu0 0.0
      %832 = vmatpush1.msra.mxu0 0.0
      %833 = vmatprep.subr.mxu0 0.0
      %834 = vmatpush1.msra.mxu0 0.0
      %835 = vmatprep.subr.mxu0 0.0
      %836 = vmatpush1.msra.mxu0 0.0
      %837 = vmatprep.subr.mxu0 0.0
      %838 = vmatpush1.msra.mxu0 0.0
      %839 = vmatprep.subr.mxu0 0.0
      %840 = vmatpush1.msra.mxu0 0.0
      %841 = vmatprep.subr.mxu0 0.0
      %842 = vmatpush1.msra.mxu0 0.0
      %843 = vmatprep.subr.mxu0 0.0
      %844 = vmatpush1.msra.mxu0 0.0
      %845 = vmatprep.subr.mxu0 0.0
      %846 = vmatpush1.msra.mxu0 0.0
      %847 = vmatprep.subr.mxu0 0.0
      %848 = vmatpush1.msra.mxu0 0.0
      %849 = vmatprep.subr.mxu0 0.0
      %850 = vmatpush1.msra.mxu0 0.0
      %851 = vmatprep.subr.mxu0 0.0
      %852 = vmatpush1.msra.mxu0 0.0
      %853 = vmatprep.subr.mxu0 0.0
      %854 = vmatpush1.msra.mxu0 0.0
      %855 = vmatprep.subr.mxu0 0.0
      %856 = vmatpush1.msra.mxu0 0.0
      %857 = vmatprep.subr.mxu0 0.0
      %858 = vmatpush1.msra.mxu0 0.0
      %859 = vmatprep.subr.mxu0 0.0
      %860 = vmatpush1.msra.mxu0 0.0
      %861 = vmatprep.subr.mxu0 0.0
      %862 = vmatpush1.msra.mxu0 0.0
      %863 = vmatprep.mubr.f32.mxu0 0.0
      %864 = vmatmul.mubr.f32.gmra.mrb[0].mxu0 %v794
      %v865 = vpop.f32.mrb[0].mxu0
      %v866 = vadd.f32 0.0, %v865
      %v867 = vpop.f32.mrb[0].mxu0
      %868 = vmatprep.mubr.f32.mxu0 0.0
      %869 = vmatmul.mubr.f32.gmra.mrb[0].mxu0 %v797
      %v870 = vpop.f32.mrb[0].mxu0
      %v871 = vadd.f32 0.0, %v870
      %v872 = vpop.f32.mrb[0].mxu0
      %873 = vdwg.mxu0
      %v874 = vmul.f32 %v866, 0.5
      %v875 = vmul.f32 %v871, 0.5
      %v876 = vmul.f32 %v866, 0.044715
      %v877 = vmul.f32 %v871, 0.044715
      %v878 = vmul.f32 %v876, %v866
      %v879 = vmul.f32 %v877, %v871
      %v880 = vmul.f32 %v878, %v866
      %v881 = vmul.f32 %v879, %v871
      %v882 = vadd.f32 %v866, %v880
      %v883 = vadd.f32 %v871, %v881
      %v884 = vmul.f32 %v882, 0.7978846
      %v885 = vmul.f32 %v883, 0.7978846
      %v886 = vtanh.pop %v884
      %v887 = vtanh.pop %v885
      %v888 = vadd.f32 %v886, 1.0
      %v889 = vadd.f32 %v887, 1.0
      %v890 = vmul.f32 %v874, %v888
      %v891 = vmul.f32 %v875, %v889
      %v892 = vadd.f32 %v629, %v890
      %v893 = vadd.f32 %v630, %v891
      %v894 = vmul.f32 %v892, 0.999995
      %v895 = vmul.f32 %v893, 0.999995
      %v896 = vld [vmem:[%s3] sm:$0xff]
      %v897 = vld [vmem:[%s3 + $0x8] sm:$0x7f]
      %v898 = vld [vmem:[%s4] sm:$0xff]
      %v899 = vld [vmem:[%s4 + $0x8] sm:$0x7f]
      %v900 = vld [vmem:[%s5] sm:$0xff]
      %v901 = vld [vmem:[%s5 + $0x8] sm:$0x7f]
      %v902 = vld [vmem:[%s9] sm:$0xff]
      %v903 = vld [vmem:[%s9 + $0x8] sm:$0xff]
      %v904 = vld [vmem:[%s9 + $0x10] sm:$0xff]
      %v905 = vld [vmem:[%s9 + $0x18] sm:$0xff]
      %v906 = vld [vmem:[%s9 + $0x20] sm:$0xff]
      %v907 = vld [vmem:[%s9 + $0x28] sm:$0xff]
      %v908 = vld [vmem:[%s9 + $0x30] sm:$0xff]
      %v909 = vld [vmem:[%s9 + $0x38] sm:$0xff]
      %v910 = vld [vmem:[%s10] sm:$0xff]
      %v911 = vld [vmem:[%s10 + $0x8] sm:$0xff]
      %v912 = vld [vmem:[%s10 + $0x10] sm:$0xff]
      %v913 = vld [vmem:[%s10 + $0x18] sm:$0xff]
      %v914 = vld [vmem:[%s10 + $0x20] sm:$0xff]
      %v915 = vld [vmem:[%s10 + $0x28] sm:$0xff]
      %v916 = vld [vmem:[%s10 + $0x30] sm:$0xff]
      %v917 = vld [vmem:[%s10 + $0x38] sm:$0xff]
      %vm918 = vcmask 121856
      %v920 = vsel %vm918, %v896, 0
      %v923 = vsel %vm918, %v897, 0
      %vm925 = vcmask 1046528
      %v927 = vsel %vm925, %v895, 0
      %929 = vmatprep.subr.mxu0 0.0
      %930 = vmatpush1.msra.mxu0 %v894
      %931 = vmatprep.subr.mxu0 0.0
      %932 = vmatpush1.msra.mxu0 %v927
      %933 = vmatprep.subr.mxu0 0.0
      %934 = vmatpush1.msra.mxu0 0.0
      %935 = vmatprep.subr.mxu0 0.0
      %936 = vmatpush1.msra.mxu0 0.0
      %937 = vmatprep.subr.mxu0 0.0
      %938 = vmatpush1.msra.mxu0 0.0
      %939 = vmatprep.subr.mxu0 0.0
      %940 = vmatpush1.msra.mxu0 0.0
      %941 = vmatprep.subr.mxu0 0.0
      %942 = vmatpush1.msra.mxu0 0.0
      %943 = vmatprep.subr.mxu0 0.0
      %944 = vmatpush1.msra.mxu0 0.0
      %945 = vmatprep.subr.mxu0 0.0
      %946 = vmatpush1.msra.mxu0 0.0
      %947 = vmatprep.subr.mxu0 0.0
      %948 = vmatpush1.msra.mxu0 0.0
      %949 = vmatprep.subr.mxu0 0.0
      %950 = vmatpush1.msra.mxu0 0.0
      %951 = vmatprep.subr.mxu0 0.0
      %952 = vmatpush1.msra.mxu0 0.0
      %953 = vmatprep.subr.mxu0 0.0
      %954 = vmatpush1.msra.mxu0 0.0
      %955 = vmatprep.subr.mxu0 0.0
      %956 = vmatpush1.msra.mxu0 0.0
      %957 = vmatprep.subr.mxu0 0.0
      %958 = vmatpush1.msra.mxu0 0.0
      %959 = vmatprep.subr.mxu0 0.0
      %960 = vmatpush1.msra.mxu0 0.0
      %961 = vmatprep.subr.mxu0 0.0
      %962 = vmatpush1.msra.mxu0 0.0
      %963 = vmatprep.subr.mxu0 0.0
      %964 = vmatpush1.msra.mxu0 0.0
      %965 = vmatprep.subr.mxu0 0.0
      %966 = vmatpush1.msra.mxu0 0.0
      %967 = vmatprep.subr.mxu0 0.0
      %968 = vmatpush1.msra.mxu0 0.0
      %969 = vmatprep.subr.mxu0 0.0
      %970 = vmatpush1.msra.mxu0 0.0
      %971 = vmatprep.subr.mxu0 0.0
      %972 = vmatpush1.msra.mxu0 0.0
      %973 = vmatprep.subr.mxu0 0.0
      %974 = vmatpush1.msra.mxu0 0.0
      %975 = vmatprep.subr.mxu0 0.0
      %976 = vmatpush1.msra.mxu0 0.0
      %977 = vmatprep.subr.mxu0 0.0
      %978 = vmatpush1.msra.mxu0 0.0
      %979 = vmatprep.subr.mxu0 0.0
      %980 = vmatpush1.msra.mxu0 0.0
      %981 = vmatprep.subr.mxu0 0.0
      %982 = vmatpush1.msra.mxu0 0.0
      %983 = vmatprep.subr.mxu0 0.0
      %984 = vmatpush1.msra.mxu0 0.0
      %985 = vmatprep.subr.mxu0 0.0
      %986 = vmatpush1.msra.mxu0 0.0
      %987 = vmatprep.subr.mxu0 0.0
      %988 = vmatpush1.msra.mxu0 0.0
      %989 = vmatprep.subr.mxu0 0.0
      %990 = vmatpush1.msra.mxu0 0.0
      %991 = vmatprep.subr.mxu0 0.0
      %992 = vmatpush1.msra.mxu0 0.0
      %993 = vmatprep.mubr.f32.mxu0 0.0
      %994 = vmatmul.mubr.f32.gmra.mrb[0].mxu0 %v920
      %v995 = vpop.f32.mrb[0].mxu0
      %v996 = vadd.f32 0.0, %v995
      %v997 = vpop.f32.mrb[0].mxu0
      %998 = vmatprep.mubr.f32.mxu0 0.0
      %999 = vmatmul.mubr.f32.gmra.mrb[0].mxu0 %v923
      %v1000 = vpop.f32.mrb[0].mxu0
      %v1001 = vadd.f32 0.0, %v1000
      %v1002 = vpop.f32.mrb[0].mxu0
      %1003 = vdwg.mxu0
      %v1005 = vsel %vm918, %v898, 0
      %v1008 = vsel %vm918, %v899, 0
      %1010 = vmatprep.subr.mxu0 0.0
      %1011 = vmatpush1.msra.mxu0 %v894
      %1012 = vmatprep.subr.mxu0 0.0
      %1013 = vmatpush1.msra.mxu0 %v927
      %1014 = vmatprep.subr.mxu0 0.0
      %1015 = vmatpush1.msra.mxu0 0.0
      %1016 = vmatprep.subr.mxu0 0.0
      %1017 = vmatpush1.msra.mxu0 0.0
      %1018 = vmatprep.subr.mxu0 0.0
      %1019 = vmatpush1.msra.mxu0 0.0
      %1020 = vmatprep.subr.mxu0 0.0
      %1021 = vmatpush1.msra.mxu0 0.0
      %1022 = vmatprep.subr.mxu0 0.0
      %1023 = vmatpush1.msra.mxu0 0.0
      %1024 = vmatprep.subr.mxu0 0.0
      %1025 = vmatpush1.msra.mxu0 0.0
      %1026 = vmatprep.subr.mxu0 0.0
      %1027 = vmatpush1.msra.mxu0 0.0
      %1028 = vmatprep.subr.mxu0 0.0
      %1029 = vmatpush1.msra.mxu0 0.0
      %1030 = vmatprep.subr.mxu0 0.0
      %1031 = vmatpush1.msra.mxu0 0.0
      %1032 = vmatprep.subr.mxu0 0.0
      %1033 = vmatpush1.msra.mxu0 0.0
      %1034 = vmatprep.subr.mxu0 0.0
      %1035 = vmatpush1.msra.mxu0 0.0
      %1036 = vmatprep.subr.mxu0 0.0
      %1037 = vmatpush1.msra.mxu0 0.0
      %1038 = vmatprep.subr.mxu0 0.0
      %1039 = vmatpush1.msra.mxu0 0.0
      %1040 = vmatprep.subr.mxu0 0.0
      %1041 = vmatpush1.msra.mxu0 0.0
      %1042 = vmatprep.subr.mxu0 0.0
      %1043 = vmatpush1.msra.mxu0 0.0
      %1044 = vmatprep.subr.mxu0 0.0
      %1045 = vmatpush1.msra.mxu0 0.0
      %1046 = vmatprep.subr.mxu0 0.0
      %1047 = vmatpush1.msra.mxu0 0.0
      %1048 = vmatprep.subr.mxu0 0.0
      %1049 = vmatpush1.msra.mxu0 0.0
      %1050 = vmatprep.subr.mxu0 0.0
      %1051 = vmatpush1.msra.mxu0 0.0
      %1052 = vmatprep.subr.mxu0 0.0
      %1053 = vmatpush1.msra.mxu0 0.0
      %1054 = vmatprep.subr.mxu0 0.0
      %1055 = vmatpush1.msra.mxu0 0.0
      %1056 = vmatprep.subr.mxu0 0.0
      %1057 = vmatpush1.msra.mxu0 0.0
      %1058 = vmatprep.subr.mxu0 0.0
      %1059 = vmatpush1.msra.mxu0 0.0
      %1060 = vmatprep.subr.mxu0 0.0
      %1061 = vmatpush1.msra.mxu0 0.0
      %1062 = vmatprep.subr.mxu0 0.0
      %1063 = vmatpush1.msra.mxu0 0.0
      %1064 = vmatprep.subr.mxu0 0.0
      %1065 = vmatpush1.msra.mxu0 0.0
      %1066 = vmatprep.subr.mxu0 0.0
      %1067 = vmatpush1.msra.mxu0 0.0
      %1068 = vmatprep.subr.mxu0 0.0
      %1069 = vmatpush1.msra.mxu0 0.0
      %1070 = vmatprep.subr.mxu0 0.0
      %1071 = vmatpush1.msra.mxu0 0.0
      %1072 = vmatprep.subr.mxu0 0.0
      %1073 = vmatpush1.msra.mxu0 0.0
      %1074 = vmatprep.mubr.f32.mxu0 0.0
      %1075 = vmatmul.mubr.f32.gmra.mrb[0].mxu0 %v1005
      %v1076 = vpop.f32.mrb[0].mxu0
      %v1077 = vadd.f32 0.0, %v1076
      %v1078 = vpop.f32.mrb[0].mxu0
      %1079 = vmatprep.mubr.f32.mxu0 0.0
      %1080 = vmatmul.mubr.f32.gmra.mrb[0].mxu0 %v1008
      %v1081 = vpop.f32.mrb[0].mxu0
      %v1082 = vadd.f32 0.0, %v1081
      %v1083 = vpop.f32.mrb[0].mxu0
      %1084 = vdwg.mxu0
      %v1086 = vsel %vm918, %v900, 0
      %v1089 = vsel %vm918, %v901, 0
      %1091 = vmatprep.subr.mxu0 0.0
      %1092 = vmatpush1.msra.mxu0 %v894
      %1093 = vmatprep.subr.mxu0 0.0
      %1094 = vmatpush1.msra.mxu0 %v927
      %1095 = vmatprep.subr.mxu0 0.0
      %1096 = vmatpush1.msra.mxu0 0.0
      %1097 = vmatprep.subr.mxu0 0.0
      %1098 = vmatpush1.msra.mxu0 0.0
      %1099 = vmatprep.subr.mxu0 0.0
      %1100 = vmatpush1.msra.mxu0 0.0
      %1101 = vmatprep.subr.mxu0 0.0
      %1102 = vmatpush1.msra.mxu0 0.0
      %1103 = vmatprep.subr.mxu0 0.0
      %1104 = vmatpush1.msra.mxu0 0.0
      %1105 = vmatprep.subr.mxu0 0.0
      %1106 = vmatpush1.msra.mxu0 0.0
      %1107 = vmatprep.subr.mxu0 0.0
      %1108 = vmatpush1.msra.mxu0 0.0
      %1109 = vmatprep.subr.mxu0 0.0
      %1110 = vmatpush1.msra.mxu0 0.0
      %1111 = vmatprep.subr.mxu0 0.0
      %1112 = vmatpush1.msra.mxu0 0.0
      %1113 = vmatprep.subr.mxu0 0.0
      %1114 = vmatpush1.msra.mxu0 0.0
      %1115 = vmatprep.subr.mxu0 0.0
      %1116 = vmatpush1.msra.mxu0 0.0
      %1117 = vmatprep.subr.mxu0 0.0
      %1118 = vmatpush1.msra.mxu0 0.0
      %1119 = vmatprep.subr.mxu0 0.0
      %1120 = vmatpush1.msra.mxu0 0.0
      %1121 = vmatprep.subr.mxu0 0.0
      %1122 = vmatpush1.msra.mxu0 0.0
      %1123 = vmatprep.subr.mxu0 0.0
      %1124 = vmatpush1.msra.mxu0 0.0
      %1125 = vmatprep.subr.mxu0 0.0
      %1126 = vmatpush1.msra.mxu0 0.0
      %1127 = vmatprep.subr.mxu0 0.0
      %1128 = vmatpush1.msra.mxu0 0.0
      %1129 = vmatprep.subr.mxu0 0.0
      %1130 = vmatpush1.msra.mxu0 0.0
      %1131 = vmatprep.subr.mxu0 0.0
      %1132 = vmatpush1.msra.mxu0 0.0
      %1133 = vmatprep.subr.mxu0 0.0
      %1134 = vmatpush1.msra.mxu0 0.0
      %1135 = vmatprep.subr.mxu0 0.0
      %1136 = vmatpush1.msra.mxu0 0.0
      %1137 = vmatprep.subr.mxu0 0.0
      %1138 = vmatpush1.msra.mxu0 0.0
      %1139 = vmatprep.subr.mxu0 0.0
      %1140 = vmatpush1.msra.mxu0 0.0
      %1141 = vmatprep.subr.mxu0 0.0
      %1142 = vmatpush1.msra.mxu0 0.0
      %1143 = vmatprep.subr.mxu0 0.0
      %1144 = vmatpush1.msra.mxu0 0.0
      %1145 = vmatprep.subr.mxu0 0.0
      %1146 = vmatpush1.msra.mxu0 0.0
      %1147 = vmatprep.subr.mxu0 0.0
      %1148 = vmatpush1.msra.mxu0 0.0
      %1149 = vmatprep.subr.mxu0 0.0
      %1150 = vmatpush1.msra.mxu0 0.0
      %1151 = vmatprep.subr.mxu0 0.0
      %1152 = vmatpush1.msra.mxu0 0.0
      %1153 = vmatprep.subr.mxu0 0.0
      %1154 = vmatpush1.msra.mxu0 0.0
      %1155 = vmatprep.mubr.f32.mxu0 0.0
      %1156 = vmatmul.mubr.f32.gmra.mrb[0].mxu0 %v1086
      %v1157 = vpop.f32.mrb[0].mxu0
      %v1158 = vadd.f32 0.0, %v1157
      %v1159 = vpop.f32.mrb[0].mxu0
      %1160 = vmatprep.mubr.f32.mxu0 0.0
      %1161 = vmatmul.mubr.f32.gmra.mrb[0].mxu0 %v1089
      %v1162 = vpop.f32.mrb[0].mxu0
      %v1163 = vadd.f32 0.0, %v1162
      %v1164 = vpop.f32.mrb[0].mxu0
      %1165 = vdwg.mxu0
      %1166 = vxpose.xlu0.b32.start [1/16] %v996, 128
      %1167 = vxpose.xlu0.b32.cont [2/16] %v1001, 128
      %1168 = vxpose.xlu0.b32.cont [3/16] 0.0, 128
      %1169 = vxpose.xlu0.b32.cont [4/16] 0.0, 128
      %1170 = vxpose.xlu0.b32.cont [5/16] 0.0, 128
      %1171 = vxpose.xlu0.b32.cont [6/16] 0.0, 128
      %1172 = vxpose.xlu0.b32.cont [7/16] 0.0, 128
      %1173 = vxpose.xlu0.b32.cont [8/16] 0.0, 128
      %1174 = vxpose.xlu0.b32.cont [9/16] 0.0, 128
      %1175 = vxpose.xlu0.b32.cont [10/16] 0.0, 128
      %1176 = vxpose.xlu0.b32.cont [11/16] 0.0, 128
      %1177 = vxpose.xlu0.b32.cont [12/16] 0.0, 128
      %1178 = vxpose.xlu0.b32.cont [13/16] 0.0, 128
      %1179 = vxpose.xlu0.b32.cont [14/16] 0.0, 128
      %1180 = vxpose.xlu0.b32.cont [15/16] 0.0, 128
      %1181 = vxpose.xlu0.b32.end [16/16] 0.0, 128
      %v1182 = vpop.trf.xlu0
      %v1183 = vpop.trf.xlu0
      %v1184 = vpop.trf.xlu0
      %v1185 = vpop.trf.xlu0
      %v1186 = vpop.trf.xlu0
      %v1187 = vpop.trf.xlu0
      %v1188 = vpop.trf.xlu0
      %v1189 = vpop.trf.xlu0
      %v1190 = vpop.trf.xlu0
      %v1191 = vpop.trf.xlu0
      %v1192 = vpop.trf.xlu0
      %v1193 = vpop.trf.xlu0
      %v1194 = vpop.trf.xlu0
      %v1195 = vpop.trf.xlu0
      %v1196 = vpop.trf.xlu0
      %v1197 = vpop.trf.xlu0
      %v1199 = vsel %vm918, %v1182, 0
      %v1202 = vsel %vm918, %v1183, 0
      %v1205 = vsel %vm918, %v1184, 0
      %v1208 = vsel %vm918, %v1185, 0
      %v1211 = vsel %vm918, %v1186, 0
      %v1214 = vsel %vm918, %v1187, 0
      %v1217 = vsel %vm918, %v1188, 0
      %v1220 = vsel %vm918, %v1189, 0
      %v1223 = vsel %vm925, %v1082, 0
      %1225 = vmatprep.subr.mxu0 0.0
      %1226 = vmatpush1.msra.mxu0 %v1077
      %1227 = vmatprep.subr.mxu0 0.0
      %1228 = vmatpush1.msra.mxu0 %v1223
      %1229 = vmatprep.subr.mxu0 0.0
      %1230 = vmatpush1.msra.mxu0 0.0
      %1231 = vmatprep.subr.mxu0 0.0
      %1232 = vmatpush1.msra.mxu0 0.0
      %1233 = vmatprep.subr.mxu0 0.0
      %1234 = vmatpush1.msra.mxu0 0.0
      %1235 = vmatprep.subr.mxu0 0.0
      %1236 = vmatpush1.msra.mxu0 0.0
      %1237 = vmatprep.subr.mxu0 0.0
      %1238 = vmatpush1.msra.mxu0 0.0
      %1239 = vmatprep.subr.mxu0 0.0
      %1240 = vmatpush1.msra.mxu0 0.0
      %1241 = vmatprep.subr.mxu0 0.0
      %1242 = vmatpush1.msra.mxu0 0.0
      %1243 = vmatprep.subr.mxu0 0.0
      %1244 = vmatpush1.msra.mxu0 0.0
      %1245 = vmatprep.subr.mxu0 0.0
      %1246 = vmatpush1.msra.mxu0 0.0
      %1247 = vmatprep.subr.mxu0 0.0
      %1248 = vmatpush1.msra.mxu0 0.0
      %1249 = vmatprep.subr.mxu0 0.0
      %1250 = vmatpush1.msra.mxu0 0.0
      %1251 = vmatprep.subr.mxu0 0.0
      %1252 = vmatpush1.msra.mxu0 0.0
      %1253 = vmatprep.subr.mxu0 0.0
      %1254 = vmatpush1.msra.mxu0 0.0
      %1255 = vmatprep.subr.mxu0 0.0
      %1256 = vmatpush1.msra.mxu0 0.0
      %1257 = vmatprep.subr.mxu0 0.0
      %1258 = vmatpush1.msra.mxu0 0.0
      %1259 = vmatprep.subr.mxu0 0.0
      %1260 = vmatpush1.msra.mxu0 0.0
      %1261 = vmatprep.subr.mxu0 0.0
      %1262 = vmatpush1.msra.mxu0 0.0
      %1263 = vmatprep.subr.mxu0 0.0
      %1264 = vmatpush1.msra.mxu0 0.0
      %1265 = vmatprep.subr.mxu0 0.0
      %1266 = vmatpush1.msra.mxu0 0.0
      %1267 = vmatprep.subr.mxu0 0.0
      %1268 = vmatpush1.msra.mxu0 0.0
      %1269 = vmatprep.subr.mxu0 0.0
      %1270 = vmatpush1.msra.mxu0 0.0
      %1271 = vmatprep.subr.mxu0 0.0
      %1272 = vmatpush1.msra.mxu0 0.0
      %1273 = vmatprep.subr.mxu0 0.0
      %1274 = vmatpush1.msra.mxu0 0.0
      %1275 = vmatprep.subr.mxu0 0.0
      %1276 = vmatpush1.msra.mxu0 0.0
      %1277 = vmatprep.subr.mxu0 0.0
      %1278 = vmatpush1.msra.mxu0 0.0
      %1279 = vmatprep.subr.mxu0 0.0
      %1280 = vmatpush1.msra.mxu0 0.0
      %1281 = vmatprep.subr.mxu0 0.0
      %1282 = vmatpush1.msra.mxu0 0.0
      %1283 = vmatprep.subr.mxu0 0.0
      %1284 = vmatpush1.msra.mxu0 0.0
      %1285 = vmatprep.subr.mxu0 0.0
      %1286 = vmatpush1.msra.mxu0 0.0
      %1287 = vmatprep.subr.mxu0 0.0
      %1288 = vmatpush1.msra.mxu0 0.0
      %1289 = vmatprep.mubr.f32.mxu0 0.0
      %1290 = vmatmul.mubr.f32.gmra.mrb[0].mxu0 %v1199
      %v1291 = vpop.f32.mrb[0].mxu0
      %v1292 = vadd.f32 0.0, %v1291
      %v1293 = vpop.f32.mrb[0].mxu0
      %1294 = vmatprep.mubr.f32.mxu0 0.0
      %1295 = vmatmul.mubr.f32.gmra.mrb[0].mxu0 %v1202
      %v1296 = vpop.f32.mrb[0].mxu0
      %v1297 = vadd.f32 0.0, %v1296
      %v1298 = vpop.f32.mrb[0].mxu0
      %1299 = vmatprep.mubr.f32.mxu0 0.0
      %1300 = vmatmul.mubr.f32.gmra.mrb[0].mxu0 %v1205
      %v1301 = vpop.f32.mrb[0].mxu0
      %v1302 = vadd.f32 0.0, %v1301
      %v1303 = vpop.f32.mrb[0].mxu0
      %1304 = vmatprep.mubr.f32.mxu0 0.0
      %1305 = vmatmul.mubr.f32.gmra.mrb[0].mxu0 %v1208
      %v1306 = vpop.f32.mrb[0].mxu0
      %v1307 = vadd.f32 0.0, %v1306
      %v1308 = vpop.f32.mrb[0].mxu0
      %1309 = vmatprep.mubr.f32.mxu0 0.0
      %1310 = vmatmul.mubr.f32.gmra.mrb[0].mxu0 %v1211
      %v1311 = vpop.f32.mrb[0].mxu0
      %v1312 = vadd.f32 0.0, %v1311
      %v1313 = vpop.f32.mrb[0].mxu0
      %1314 = vmatprep.mubr.f32.mxu0 0.0
      %1315 = vmatmul.mubr.f32.gmra.mrb[0].mxu0 %v1214
      %v1316 = vpop.f32.mrb[0].mxu0
      %v1317 = vadd.f32 0.0, %v1316
      %v1318 = vpop.f32.mrb[0].mxu0
      %1319 = vmatprep.mubr.f32.mxu0 0.0
      %1320 = vmatmul.mubr.f32.gmra.mrb[0].mxu0 %v1217
      %v1321 = vpop.f32.mrb[0].mxu0
      %v1322 = vadd.f32 0.0, %v1321
      %v1323 = vpop.f32.mrb[0].mxu0
      %1324 = vmatprep.mubr.f32.mxu0 0.0
      %1325 = vmatmul.mubr.f32.gmra.mrb[0].mxu0 %v1220
      %v1326 = vpop.f32.mrb[0].mxu0
      %v1327 = vadd.f32 0.0, %v1326
      %v1328 = vpop.f32.mrb[0].mxu0
      %1329 = vdwg.mxu0
      %v1330 = vmul.f32 %v1292, 0.2581989
      %v1331 = vmul.f32 %v1297, 0.2581989
      %v1332 = vmul.f32 %v1302, 0.2581989
      %v1333 = vmul.f32 %v1307, 0.2581989
      %v1334 = vmul.f32 %v1312, 0.2581989
      %v1335 = vmul.f32 %v1317, 0.2581989
      %v1336 = vmul.f32 %v1322, 0.2581989
      %v1337 = vmul.f32 %v1327, 0.2581989
      %v1338 = vadd.f32 %v1330, %v902
      %v1339 = vadd.f32 %v1331, %v903
      %v1340 = vadd.f32 %v1332, %v904
      %v1341 = vadd.f32 %v1333, %v905
      %v1342 = vadd.f32 %v1334, %v906
      %v1343 = vadd.f32 %v1335, %v907
      %v1344 = vadd.f32 %v1336, %v908
      %v1345 = vadd.f32 %v1337, %v909
      %v1346 = vsel %vm631, %v1338, -inf
      %1347 = vmax.xlane.f32.xlu0 %v1346
      %v1348 = vpop.xlane.xlu0 %1347
      %v1349 = vsel %vm631, %v1339, -inf
      %1350 = vmax.xlane.f32.xlu0 %v1349
      %v1351 = vpop.xlane.xlu0 %1350
      %v1352 = vsel %vm631, %v1340, -inf
      %1353 = vmax.xlane.f32.xlu0 %v1352
      %v1354 = vpop.xlane.xlu0 %1353
      %v1355 = vsel %vm631, %v1341, -inf
      %1356 = vmax.xlane.f32.xlu0 %v1355
      %v1357 = vpop.xlane.xlu0 %1356
      %v1358 = vsel %vm631, %v1342, -inf
      %1359 = vmax.xlane.f32.xlu0 %v1358
      %v1360 = vpop.xlane.xlu0 %1359
      %v1361 = vsel %vm631, %v1343, -inf
      %1362 = vmax.xlane.f32.xlu0 %v1361
      %v1363 = vpop.xlane.xlu0 %1362
      %v1364 = vsel %vm631, %v1344, -inf
      %1365 = vmax.xlane.f32.xlu0 %v1364
      %v1366 = vpop.xlane.xlu0 %1365
      %v1367 = vsel %vm631, %v1345, -inf
      %1368 = vmax.xlane.f32.xlu0 %v1367
      %v1369 = vpop.xlane.xlu0 %1368
      %v1370 = vsub.f32 %v1338, %v1348
      %v1371 = vsub.f32 %v1339, %v1351
      %v1372 = vsub.f32 %v1340, %v1354
      %v1373 = vsub.f32 %v1341, %v1357
      %v1374 = vsub.f32 %v1342, %v1360
      %v1375 = vsub.f32 %v1343, %v1363
      %v1376 = vsub.f32 %v1344, %v1366
      %v1377 = vsub.f32 %v1345, %v1369
      %v1378 = vmul.f32 %v1370, 1.442695
      %v1379 = vpow.pop %v1378
      %v1380 = vmul.f32 %v1371, 1.442695
      %v1381 = vpow.pop %v1380
      %v1382 = vmul.f32 %v1372, 1.442695
      %v1383 = vpow.pop %v1382
      %v1384 = vmul.f32 %v1373, 1.442695
      %v1385 = vpow.pop %v1384
      %v1386 = vmul.f32 %v1374, 1.442695
      %v1387 = vpow.pop %v1386
      %v1388 = vmul.f32 %v1375, 1.442695
      %v1389 = vpow.pop %v1388
      %v1390 = vmul.f32 %v1376, 1.442695
      %v1391 = vpow.pop %v1390
      %v1392 = vmul.f32 %v1377, 1.442695
      %v1393 = vpow.pop %v1392
      %v1394 = vsel %vm631, %v1379, 0.0
      %1395 = vadd.xlane.f32.xlu0 %v1394
      %v1396 = vpop.xlane.xlu0 %1395
      %v1397 = vsel %vm631, %v1381, 0.0
      %1398 = vadd.xlane.f32.xlu0 %v1397
      %v1399 = vpop.xlane.xlu0 %1398
      %v1400 = vsel %vm631, %v1383, 0.0
      %1401 = vadd.xlane.f32.xlu0 %v1400
      %v1402 = vpop.xlane.xlu0 %1401
      %v1403 = vsel %vm631, %v1385, 0.0
      %1404 = vadd.xlane.f32.xlu0 %v1403
      %v1405 = vpop.xlane.xlu0 %1404
      %v1406 = vsel %vm631, %v1387, 0.0
      %1407 = vadd.xlane.f32.xlu0 %v1406
      %v1408 = vpop.xlane.xlu0 %1407
      %v1409 = vsel %vm631, %v1389, 0.0
      %1410 = vadd.xlane.f32.xlu0 %v1409
      %v1411 = vpop.xlane.xlu0 %1410
      %v1412 = vsel %vm631, %v1391, 0.0
      %1413 = vadd.xlane.f32.xlu0 %v1412
      %v1414 = vpop.xlane.xlu0 %1413
      %v1415 = vsel %vm631, %v1393, 0.0
      %1416 = vadd.xlane.f32.xlu0 %v1415
      %v1417 = vpop.xlane.xlu0 %1416
      %v1418 = vrcp.pop %v1396
      %v1419 = vmul.f32 %v1379, %v1418
      %v1420 = vrcp.pop %v1399
      %v1421 = vmul.f32 %v1381, %v1420
      %v1422 = vrcp.pop %v1402
      %v1423 = vmul.f32 %v1383, %v1422
      %v1424 = vrcp.pop %v1405
      %v1425 = vmul.f32 %v1385, %v1424
      %v1426 = vrcp.pop %v1408
      %v1427 = vmul.f32 %v1387, %v1426
      %v1428 = vrcp.pop %v1411
      %v1429 = vmul.f32 %v1389, %v1428
      %v1430 = vrcp.pop %v1414
      %v1431 = vmul.f32 %v1391, %v1430
      %v1432 = vrcp.pop %v1417
      %v1433 = vmul.f32 %v1393, %v1432
      %1434 = vxpose.xlu0.b32.start [1/16] %v1419, 128
      %1435 = vxpose.xlu0.b32.cont [2/16] %v1421, 128
      %1436 = vxpose.xlu0.b32.cont [3/16] %v1423, 128
      %1437 = vxpose.xlu0.b32.cont [4/16] %v1425, 128
      %1438 = vxpose.xlu0.b32.cont [5/16] %v1427, 128
      %1439 = vxpose.xlu0.b32.cont [6/16] %v1429, 128
      %1440 = vxpose.xlu0.b32.cont [7/16] %v1431, 128
      %1441 = vxpose.xlu0.b32.cont [8/16] %v1433, 128
      %1442 = vxpose.xlu0.b32.cont [9/16] 0.0, 128
      %1443 = vxpose.xlu0.b32.cont [10/16] 0.0, 128
      %1444 = vxpose.xlu0.b32.cont [11/16] 0.0, 128
      %1445 = vxpose.xlu0.b32.cont [12/16] 0.0, 128
      %1446 = vxpose.xlu0.b32.cont [13/16] 0.0, 128
      %1447 = vxpose.xlu0.b32.cont [14/16] 0.0, 128
      %1448 = vxpose.xlu0.b32.cont [15/16] 0.0, 128
      %1449 = vxpose.xlu0.b32.end [16/16] 0.0, 128
      %v1450 = vpop.trf.xlu0
      %v1451 = vpop.trf.xlu0
      %v1452 = vpop.trf.xlu0
      %v1453 = vpop.trf.xlu0
      %v1454 = vpop.trf.xlu0
      %v1455 = vpop.trf.xlu0
      %v1456 = vpop.trf.xlu0
      %v1457 = vpop.trf.xlu0
      %v1458 = vpop.trf.xlu0
      %v1459 = vpop.trf.xlu0
      %v1460 = vpop.trf.xlu0
      %v1461 = vpop.trf.xlu0
      %v1462 = vpop.trf.xlu0
      %v1463 = vpop.trf.xlu0
      %v1464 = vpop.trf.xlu0
      %v1465 = vpop.trf.xlu0
      %v1467 = vsel %vm631, %v1450, 0
      %v1470 = vsel %vm631, %v1451, 0
      %v1473 = vsel %vm631, %v1452, 0
      %v1476 = vsel %vm631, %v1453, 0
      %v1479 = vsel %vm631, %v1454, 0
      %v1482 = vsel %vm631, %v1455, 0
      %v1485 = vsel %vm631, %v1456, 0
      %v1488 = vsel %vm631, %v1457, 0
      %1490 = vmatprep.subr.mxu0 0.0
      %1491 = vmatpush1.msra.mxu0 %v910
      %1492 = vmatprep.subr.mxu0 0.0
      %1493 = vmatpush1.msra.mxu0 %v911
      %1494 = vmatprep.subr.mxu0 0.0
      %1495 = vmatpush1.msra.mxu0 %v912
      %1496 = vmatprep.subr.mxu0 0.0
      %1497 = vmatpush1.msra.mxu0 %v913
      %1498 = vmatprep.subr.mxu0 0.0
      %1499 = vmatpush1.msra.mxu0 %v914
      %1500 = vmatprep.subr.mxu0 0.0
      %1501 = vmatpush1.msra.mxu0 %v915
      %1502 = vmatprep.subr.mxu0 0.0
      %1503 = vmatpush1.msra.mxu0 %v916
      %1504 = vmatprep.subr.mxu0 0.0
      %1505 = vmatpush1.msra.mxu0 %v917
      %1506 = vmatprep.subr.mxu0 0.0
      %1507 = vmatpush1.msra.mxu0 0.0
      %1508 = vmatprep.subr.mxu0 0.0
      %1509 = vmatpush1.msra.mxu0 0.0
      %1510 = vmatprep.subr.mxu0 0.0
      %1511 = vmatpush1.msra.mxu0 0.0
      %1512 = vmatprep.subr.mxu0 0.0
      %1513 = vmatpush1.msra.mxu0 0.0
      %1514 = vmatprep.subr.mxu0 0.0
      %1515 = vmatpush1.msra.mxu0 0.0
      %1516 = vmatprep.subr.mxu0 0.0
      %1517 = vmatpush1.msra.mxu0 0.0
      %1518 = vmatprep.subr.mxu0 0.0
      %1519 = vmatpush1.msra.mxu0 0.0
      %1520 = vmatprep.subr.mxu0 0.0
      %1521 = vmatpush1.msra.mxu0 0.0
      %1522 = vmatprep.subr.mxu0 0.0
      %1523 = vmatpush1.msra.mxu0 0.0
      %1524 = vmatprep.subr.mxu0 0.0
      %1525 = vmatpush1.msra.mxu0 0.0
      %1526 = vmatprep.subr.mxu0 0.0
      %1527 = vmatpush1.msra.mxu0 0.0
      %1528 = vmatprep.subr.mxu0 0.0
      %1529 = vmatpush1.msra.mxu0 0.0
      %1530 = vmatprep.subr.mxu0 0.0
      %1531 = vmatpush1.msra.mxu0 0.0
      %1532 = vmatprep.subr.mxu0 0.0
      %1533 = vmatpush1.msra.mxu0 0.0
      %1534 = vmatprep.subr.mxu0 0.0
      %1535 = vmatpush1.msra.mxu0 0.0
      %1536 = vmatprep.subr.mxu0 0.0
      %1537 = vmatpush1.msra.mxu0 0.0
      %1538 = vmatprep.subr.mxu0 0.0
      %1539 = vmatpush1.msra.mxu0 0.0
      %1540 = vmatprep.subr.mxu0 0.0
      %1541 = vmatpush1.msra.mxu0 0.0
      %1542 = vmatprep.subr.mxu0 0.0
      %1543 = vmatpush1.msra.mxu0 0.0
      %1544 = vmatprep.subr.mxu0 0.0
      %1545 = vmatpush1.msra.mxu0 0.0
      %1546 = vmatprep.subr.mxu0 0.0
      %1547 = vmatpush1.msra.mxu0 0.0
      %1548 = vmatprep.subr.mxu0 0.0
      %1549 = vmatpush1.msra.mxu0 0.0
      %1550 = vmatprep.subr.mxu0 0.0
      %1551 = vmatpush1.msra.mxu0 0.0
      %1552 = vmatprep.subr.mxu0 0.0
      %1553 = vmatpush1.msra.mxu0 0.0
      %1554 = vmatprep.mubr.f32.mxu0 0.0
      %1555 = vmatmul.mubr.f32.gmra.mrb[0].mxu0 %v1467
      %v1556 = vpop.f32.mrb[0].mxu0
      %v1557 = vadd.f32 0.0, %v1556
      %v1558 = vpop.f32.mrb[0].mxu0
      %1559 = vmatprep.mubr.f32.mxu0 0.0
      %1560 = vmatmul.mubr.f32.gmra.mrb[0].mxu0 %v1470
      %v1561 = vpop.f32.mrb[0].mxu0
      %v1562 = vadd.f32 0.0, %v1561
      %v1563 = vpop.f32.mrb[0].mxu0
      %1564 = vmatprep.mubr.f32.mxu0 0.0
      %1565 = vmatmul.mubr.f32.gmra.mrb[0].mxu0 %v1473
      %v1566 = vpop.f32.mrb[0].mxu0
      %v1567 = vadd.f32 0.0, %v1566
      %v1568 = vpop.f32.mrb[0].mxu0
      %1569 = vmatprep.mubr.f32.mxu0 0.0
      %1570 = vmatmul.mubr.f32.gmra.mrb[0].mxu0 %v1476
      %v1571 = vpop.f32.mrb[0].mxu0
      %v1572 = vadd.f32 0.0, %v1571
      %v1573 = vpop.f32.mrb[0].mxu0
      %1574 = vmatprep.mubr.f32.mxu0 0.0
      %1575 = vmatmul.mubr.f32.gmra.mrb[0].mxu0 %v1479
      %v1576 = vpop.f32.mrb[0].mxu0
      %v1577 = vadd.f32 0.0, %v1576
      %v1578 = vpop.f32.mrb[0].mxu0
      %1579 = vmatprep.mubr.f32.mxu0 0.0
      %1580 = vmatmul.mubr.f32.gmra.mrb[0].mxu0 %v1482
      %v1581 = vpop.f32.mrb[0].mxu0
      %v1582 = vadd.f32 0.0, %v1581
      %v1583 = vpop.f32.mrb[0].mxu0
      %1584 = vmatprep.mubr.f32.mxu0 0.0
      %1585 = vmatmul.mubr.f32.gmra.mrb[0].mxu0 %v1485
      %v1586 = vpop.f32.mrb[0].mxu0
      %v1587 = vadd.f32 0.0, %v1586
      %v1588 = vpop.f32.mrb[0].mxu0
      %1589 = vmatprep.mubr.f32.mxu0 0.0
      %1590 = vmatmul.mubr.f32.gmra.mrb[0].mxu0 %v1488
      %v1591 = vpop.f32.mrb[0].mxu0
      %v1592 = vadd.f32 0.0, %v1591
      %v1593 = vpop.f32.mrb[0].mxu0
      %1594 = vdwg.mxu0
      %v1596 = vsel %vm631, %v1158, 0
      %v1599 = vsel %vm631, %v1163, 0
      %1601 = vmatprep.subr.mxu0 0.0
      %1602 = vmatpush1.msra.mxu0 %v1557
      %1603 = vmatprep.subr.mxu0 0.0
      %1604 = vmatpush1.msra.mxu0 %v1562
      %1605 = vmatprep.subr.mxu0 0.0
      %1606 = vmatpush1.msra.mxu0 %v1567
      %1607 = vmatprep.subr.mxu0 0.0
      %1608 = vmatpush1.msra.mxu0 %v1572
      %1609 = vmatprep.subr.mxu0 0.0
      %1610 = vmatpush1.msra.mxu0 %v1577
      %1611 = vmatprep.subr.mxu0 0.0
      %1612 = vmatpush1.msra.mxu0 %v1582
      %1613 = vmatprep.subr.mxu0 0.0
      %1614 = vmatpush1.msra.mxu0 %v1587
      %1615 = vmatprep.subr.mxu0 0.0
      %1616 = vmatpush1.msra.mxu0 %v1592
      %1617 = vmatprep.subr.mxu0 0.0
      %1618 = vmatpush1.msra.mxu0 0.0
      %1619 = vmatprep.subr.mxu0 0.0
      %1620 = vmatpush1.msra.mxu0 0.0
      %1621 = vmatprep.subr.mxu0 0.0
      %1622 = vmatpush1.msra.mxu0 0.0
      %1623 = vmatprep.subr.mxu0 0.0
      %1624 = vmatpush1.msra.mxu0 0.0
      %1625 = vmatprep.subr.mxu0 0.0
      %1626 = vmatpush1.msra.mxu0 0.0
      %1627 = vmatprep.subr.mxu0 0.0
      %1628 = vmatpush1.msra.mxu0 0.0
      %1629 = vmatprep.subr.mxu0 0.0
      %1630 = vmatpush1.msra.mxu0 0.0
      %1631 = vmatprep.subr.mxu0 0.0
      %1632 = vmatpush1.msra.mxu0 0.0
      %1633 = vmatprep.subr.mxu0 0.0
      %1634 = vmatpush1.msra.mxu0 0.0
      %1635 = vmatprep.subr.mxu0 0.0
      %1636 = vmatpush1.msra.mxu0 0.0
      %1637 = vmatprep.subr.mxu0 0.0
      %1638 = vmatpush1.msra.mxu0 0.0
      %1639 = vmatprep.subr.mxu0 0.0
      %1640 = vmatpush1.msra.mxu0 0.0
      %1641 = vmatprep.subr.mxu0 0.0
      %1642 = vmatpush1.msra.mxu0 0.0
      %1643 = vmatprep.subr.mxu0 0.0
      %1644 = vmatpush1.msra.mxu0 0.0
      %1645 = vmatprep.subr.mxu0 0.0
      %1646 = vmatpush1.msra.mxu0 0.0
      %1647 = vmatprep.subr.mxu0 0.0
      %1648 = vmatpush1.msra.mxu0 0.0
      %1649 = vmatprep.subr.mxu0 0.0
      %1650 = vmatpush1.msra.mxu0 0.0
      %1651 = vmatprep.subr.mxu0 0.0
      %1652 = vmatpush1.msra.mxu0 0.0
      %1653 = vmatprep.subr.mxu0 0.0
      %1654 = vmatpush1.msra.mxu0 0.0
      %1655 = vmatprep.subr.mxu0 0.0
      %1656 = vmatpush1.msra.mxu0 0.0
      %1657 = vmatprep.subr.mxu0 0.0
      %1658 = vmatpush1.msra.mxu0 0.0
      %1659 = vmatprep.subr.mxu0 0.0
      %1660 = vmatpush1.msra.mxu0 0.0
      %1661 = vmatprep.subr.mxu0 0.0
      %1662 = vmatpush1.msra.mxu0 0.0
      %1663 = vmatprep.subr.mxu0 0.0
      %1664 = vmatpush1.msra.mxu0 0.0
      %1665 = vmatprep.mubr.f32.mxu0 0.0
      %1666 = vmatmul.mubr.f32.gmra.mrb[0].mxu0 %v1596
      %v1667 = vpop.f32.mrb[0].mxu0
      %v1668 = vadd.f32 0.0, %v1667
      %v1669 = vpop.f32.mrb[0].mxu0
      %1670 = vmatprep.mubr.f32.mxu0 0.0
      %1671 = vmatmul.mubr.f32.gmra.mrb[0].mxu0 %v1599
      %v1672 = vpop.f32.mrb[0].mxu0
      %v1673 = vadd.f32 0.0, %v1672
      %v1674 = vpop.f32.mrb[0].mxu0
      %1675 = vdwg.mxu0
      %v1676 = vld [vmem:[%s6] sm:$0xff]
      %v1677 = vld [vmem:[%s6 + $0x8] sm:$0x7f]
      %v1678 = vld [vmem:[%s7] sm:$0xff]
      %v1679 = vld [vmem:[%s7 + $0x8] sm:$0x7f]
      %v1680 = vld [vmem:[%s8] sm:$0xff]
      %v1681 = vld [vmem:[%s8 + $0x8] sm:$0x7f]
      %v1682 = vld [vmem:[%s11] sm:$0xff]
      %v1683 = vld [vmem:[%s11 + $0x8] sm:$0xff]
      %v1684 = vld [vmem:[%s12] sm:$0xff]
      %v1685 = vld [vmem:[%s12 + $0x8] sm:$0xff]
      %v1687 = vsel %vm918, %v1676, 0
      %v1690 = vsel %vm918, %v1677, 0
      %v1693 = vsel %vm925, %v1673, 0
      %1695 = vmatprep.subr.mxu0 0.0
      %1696 = vmatpush1.msra.mxu0 %v1668
      %1697 = vmatprep.subr.mxu0 0.0
      %1698 = vmatpush1.msra.mxu0 %v1693
      %1699 = vmatprep.subr.mxu0 0.0
      %1700 = vmatpush1.msra.mxu0 0.0
      %1701 = vmatprep.subr.mxu0 0.0
      %1702 = vmatpush1.msra.mxu0 0.0
      %1703 = vmatprep.subr.mxu0 0.0
      %1704 = vmatpush1.msra.mxu0 0.0
      %1705 = vmatprep.subr.mxu0 0.0
      %1706 = vmatpush1.msra.mxu0 0.0
      %1707 = vmatprep.subr.mxu0 0.0
      %1708 = vmatpush1.msra.mxu0 0.0
      %1709 = vmatprep.subr.mxu0 0.0
      %1710 = vmatpush1.msra.mxu0 0.0
      %1711 = vmatprep.subr.mxu0 0.0
      %1712 = vmatpush1.msra.mxu0 0.0
      %1713 = vmatprep.subr.mxu0 0.0
      %1714 = vmatpush1.msra.mxu0 0.0
      %1715 = vmatprep.subr.mxu0 0.0
      %1716 = vmatpush1.msra.mxu0 0.0
      %1717 = vmatprep.subr.mxu0 0.0
      %1718 = vmatpush1.msra.mxu0 0.0
      %1719 = vmatprep.subr.mxu0 0.0
      %1720 = vmatpush1.msra.mxu0 0.0
      %1721 = vmatprep.subr.mxu0 0.0
      %1722 = vmatpush1.msra.mxu0 0.0
      %1723 = vmatprep.subr.mxu0 0.0
      %1724 = vmatpush1.msra.mxu0 0.0
      %1725 = vmatprep.subr.mxu0 0.0
      %1726 = vmatpush1.msra.mxu0 0.0
      %1727 = vmatprep.subr.mxu0 0.0
      %1728 = vmatpush1.msra.mxu0 0.0
      %1729 = vmatprep.subr.mxu0 0.0
      %1730 = vmatpush1.msra.mxu0 0.0
      %1731 = vmatprep.subr.mxu0 0.0
      %1732 = vmatpush1.msra.mxu0 0.0
      %1733 = vmatprep.subr.mxu0 0.0
      %1734 = vmatpush1.msra.mxu0 0.0
      %1735 = vmatprep.subr.mxu0 0.0
      %1736 = vmatpush1.msra.mxu0 0.0
      %1737 = vmatprep.subr.mxu0 0.0
      %1738 = vmatpush1.msra.mxu0 0.0
      %1739 = vmatprep.subr.mxu0 0.0
      %1740 = vmatpush1.msra.mxu0 0.0
      %1741 = vmatprep.subr.mxu0 0.0
      %1742 = vmatpush1.msra.mxu0 0.0
      %1743 = vmatprep.subr.mxu0 0.0
      %1744 = vmatpush1.msra.mxu0 0.0
      %1745 = vmatprep.subr.mxu0 0.0
      %1746 = vmatpush1.msra.mxu0 0.0
      %1747 = vmatprep.subr.mxu0 0.0
      %1748 = vmatpush1.msra.mxu0 0.0
      %1749 = vmatprep.subr.mxu0 0.0
      %1750 = vmatpush1.msra.mxu0 0.0
      %1751 = vmatprep.subr.mxu0 0.0
      %1752 = vmatpush1.msra.mxu0 0.0
      %1753 = vmatprep.subr.mxu0 0.0
      %1754 = vmatpush1.msra.mxu0 0.0
      %1755 = vmatprep.subr.mxu0 0.0
      %1756 = vmatpush1.msra.mxu0 0.0
      %1757 = vmatprep.subr.mxu0 0.0
      %1758 = vmatpush1.msra.mxu0 0.0
      %1759 = vmatprep.mubr.f32.mxu0 0.0
      %1760 = vmatmul.mubr.f32.gmra.mrb[0].mxu0 %v1687
      %v1761 = vpop.f32.mrb[0].mxu0
      %v1762 = vadd.f32 0.0, %v1761
      %v1763 = vpop.f32.mrb[0].mxu0
      %1764 = vmatprep.mubr.f32.mxu0 0.0
      %1765 = vmatmul.mubr.f32.gmra.mrb[0].mxu0 %v1690
      %v1766 = vpop.f32.mrb[0].mxu0
      %v1767 = vadd.f32 0.0, %v1766
      %v1768 = vpop.f32.mrb[0].mxu0
      %1769 = vdwg.mxu0
      %v1771 = vsel %vm918, %v1678, 0
      %v1774 = vsel %vm918, %v1679, 0
      %1776 = vmatprep.subr.mxu0 0.0
      %1777 = vmatpush1.msra.mxu0 %v1668
      %1778 = vmatprep.subr.mxu0 0.0
      %1779 = vmatpush1.msra.mxu0 %v1693
      %1780 = vmatprep.subr.mxu0 0.0
      %1781 = vmatpush1.msra.mxu0 0.0
      %1782 = vmatprep.subr.mxu0 0.0
      %1783 = vmatpush1.msra.mxu0 0.0
      %1784 = vmatprep.subr.mxu0 0.0
      %1785 = vmatpush1.msra.mxu0 0.0
      %1786 = vmatprep.subr.mxu0 0.0
      %1787 = vmatpush1.msra.mxu0 0.0
      %1788 = vmatprep.subr.mxu0 0.0
      %1789 = vmatpush1.msra.mxu0 0.0
      %1790 = vmatprep.subr.mxu0 0.0
      %1791 = vmatpush1.msra.mxu0 0.0
      %1792 = vmatprep.subr.mxu0 0.0
      %1793 = vmatpush1.msra.mxu0 0.0
      %1794 = vmatprep.subr.mxu0 0.0
      %1795 = vmatpush1.msra.mxu0 0.0
      %1796 = vmatprep.subr.mxu0 0.0
      %1797 = vmatpush1.msra.mxu0 0.0
      %1798 = vmatprep.subr.mxu0 0.0
      %1799 = vmatpush1.msra.mxu0 0.0
      %1800 = vmatprep.subr.mxu0 0.0
      %1801 = vmatpush1.msra.mxu0 0.0
      %1802 = vmatprep.subr.mxu0 0.0
      %1803 = vmatpush1.msra.mxu0 0.0
      %1804 = vmatprep.subr.mxu0 0.0
      %1805 = vmatpush1.msra.mxu0 0.0
      %1806 = vmatprep.subr.mxu0 0.0
      %1807 = vmatpush1.msra.mxu0 0.0
      %1808 = vmatprep.subr.mxu0 0.0
      %1809 = vmatpush1.msra.mxu0 0.0
      %1810 = vmatprep.subr.mxu0 0.0
      %1811 = vmatpush1.msra.mxu0 0.0
      %1812 = vmatprep.subr.mxu0 0.0
      %1813 = vmatpush1.msra.mxu0 0.0
      %1814 = vmatprep.subr.mxu0 0.0
      %1815 = vmatpush1.msra.mxu0 0.0
      %1816 = vmatprep.subr.mxu0 0.0
      %1817 = vmatpush1.msra.mxu0 0.0
      %1818 = vmatprep.subr.mxu0 0.0
      %1819 = vmatpush1.msra.mxu0 0.0
      %1820 = vmatprep.subr.mxu0 0.0
      %1821 = vmatpush1.msra.mxu0 0.0
      %1822 = vmatprep.subr.mxu0 0.0
      %1823 = vmatpush1.msra.mxu0 0.0
      %1824 = vmatprep.subr.mxu0 0.0
      %1825 = vmatpush1.msra.mxu0 0.0
      %1826 = vmatprep.subr.mxu0 0.0
      %1827 = vmatpush1.msra.mxu0 0.0
      %1828 = vmatprep.subr.mxu0 0.0
      %1829 = vmatpush1.msra.mxu0 0.0
      %1830 = vmatprep.subr.mxu0 0.0
      %1831 = vmatpush1.msra.mxu0 0.0
      %1832 = vmatprep.subr.mxu0 0.0
      %1833 = vmatpush1.msra.mxu0 0.0
      %1834 = vmatprep.subr.mxu0 0.0
      %1835 = vmatpush1.msra.mxu0 0.0
      %1836 = vmatprep.subr.mxu0 0.0
      %1837 = vmatpush1.msra.mxu0 0.0
      %1838 = vmatprep.subr.mxu0 0.0
      %1839 = vmatpush1.msra.mxu0 0.0
      %1840 = vmatprep.mubr.f32.mxu0 0.0
      %1841 = vmatmul.mubr.f32.gmra.mrb[0].mxu0 %v1771
      %v1842 = vpop.f32.mrb[0].mxu0
      %v1843 = vadd.f32 0.0, %v1842
      %v1844 = vpop.f32.mrb[0].mxu0
      %1845 = vmatprep.mubr.f32.mxu0 0.0
      %1846 = vmatmul.mubr.f32.gmra.mrb[0].mxu0 %v1774
      %v1847 = vpop.f32.mrb[0].mxu0
      %v1848 = vadd.f32 0.0, %v1847
      %v1849 = vpop.f32.mrb[0].mxu0
      %1850 = vdwg.mxu0
      %v1852 = vsel %vm918, %v1680, 0
      %v1855 = vsel %vm918, %v1681, 0
      %1857 = vmatprep.subr.mxu0 0.0
      %1858 = vmatpush1.msra.mxu0 %v1668
      %1859 = vmatprep.subr.mxu0 0.0
      %1860 = vmatpush1.msra.mxu0 %v1693
      %1861 = vmatprep.subr.mxu0 0.0
      %1862 = vmatpush1.msra.mxu0 0.0
      %1863 = vmatprep.subr.mxu0 0.0
      %1864 = vmatpush1.msra.mxu0 0.0
      %1865 = vmatprep.subr.mxu0 0.0
      %1866 = vmatpush1.msra.mxu0 0.0
      %1867 = vmatprep.subr.mxu0 0.0
      %1868 = vmatpush1.msra.mxu0 0.0
      %1869 = vmatprep.subr.mxu0 0.0
      %1870 = vmatpush1.msra.mxu0 0.0
      %1871 = vmatprep.subr.mxu0 0.0
      %1872 = vmatpush1.msra.mxu0 0.0
      %1873 = vmatprep.subr.mxu0 0.0
      %1874 = vmatpush1.msra.mxu0 0.0
      %1875 = vmatprep.subr.mxu0 0.0
      %1876 = vmatpush1.msra.mxu0 0.0
      %1877 = vmatprep.subr.mxu0 0.0
      %1878 = vmatpush1.msra.mxu0 0.0
      %1879 = vmatprep.subr.mxu0 0.0
      %1880 = vmatpush1.msra.mxu0 0.0
      %1881 = vmatprep.subr.mxu0 0.0
      %1882 = vmatpush1.msra.mxu0 0.0
      %1883 = vmatprep.subr.mxu0 0.0
      %1884 = vmatpush1.msra.mxu0 0.0
      %1885 = vmatprep.subr.mxu0 0.0
      %1886 = vmatpush1.msra.mxu0 0.0
      %1887 = vmatprep.subr.mxu0 0.0
      %1888 = vmatpush1.msra.mxu0 0.0
      %1889 = vmatprep.subr.mxu0 0.0
      %1890 = vmatpush1.msra.mxu0 0.0
      %1891 = vmatprep.subr.mxu0 0.0
      %1892 = vmatpush1.msra.mxu0 0.0
      %1893 = vmatprep.subr.mxu0 0.0
      %1894 = vmatpush1.msra.mxu0 0.0
      %1895 = vmatprep.subr.mxu0 0.0
      %1896 = vmatpush1.msra.mxu0 0.0
      %1897 = vmatprep.subr.mxu0 0.0
      %1898 = vmatpush1.msra.mxu0 0.0
      %1899 = vmatprep.subr.mxu0 0.0
      %1900 = vmatpush1.msra.mxu0 0.0
      %1901 = vmatprep.subr.mxu0 0.0
      %1902 = vmatpush1.msra.mxu0 0.0
      %1903 = vmatprep.subr.mxu0 0.0
      %1904 = vmatpush1.msra.mxu0 0.0
      %1905 = vmatprep.subr.mxu0 0.0
      %1906 = vmatpush1.msra.mxu0 0.0
      %1907 = vmatprep.subr.mxu0 0.0
      %1908 = vmatpush1.msra.mxu0 0.0
      %1909 = vmatprep.subr.mxu0 0.0
      %1910 = vmatpush1.msra.mxu0 0.0
      %1911 = vmatprep.subr.mxu0 0.0
      %1912 = vmatpush1.msra.mxu0 0.0
      %1913 = vmatprep.subr.mxu0 0.0
      %1914 = vmatpush1.msra.mxu0 0.0
      %1915 = vmatprep.subr.mxu0 0.0
      %1916 = vmatpush1.msra.mxu0 0.0
      %1917 = vmatprep.subr.mxu0 0.0
      %1918 = vmatpush1.msra.mxu0 0.0
      %1919 = vmatprep.subr.mxu0 0.0
      %1920 = vmatpush1.msra.mxu0 0.0
      %1921 = vmatprep.mubr.f32.mxu0 0.0
      %1922 = vmatmul.mubr.f32.gmra.mrb[0].mxu0 %v1852
      %v1923 = vpop.f32.mrb[0].mxu0
      %v1924 = vadd.f32 0.0, %v1923
      %v1925 = vpop.f32.mrb[0].mxu0
      %1926 = vmatprep.mubr.f32.mxu0 0.0
      %1927 = vmatmul.mubr.f32.gmra.mrb[0].mxu0 %v1855
      %v1928 = vpop.f32.mrb[0].mxu0
      %v1929 = vadd.f32 0.0, %v1928
      %v1930 = vpop.f32.mrb[0].mxu0
      %1931 = vdwg.mxu0
      %1932 = vxpose.xlu0.b32.start [1/16] %v1762, 128
      %1933 = vxpose.xlu0.b32.cont [2/16] %v1767, 128
      %1934 = vxpose.xlu0.b32.cont [3/16] 0.0, 128
      %1935 = vxpose.xlu0.b32.cont [4/16] 0.0, 128
      %1936 = vxpose.xlu0.b32.cont [5/16] 0.0, 128
      %1937 = vxpose.xlu0.b32.cont [6/16] 0.0, 128
      %1938 = vxpose.xlu0.b32.cont [7/16] 0.0, 128
      %1939 = vxpose.xlu0.b32.cont [8/16] 0.0, 128
      %1940 = vxpose.xlu0.b32.cont [9/16] 0.0, 128
      %1941 = vxpose.xlu0.b32.cont [10/16] 0.0, 128
      %1942 = vxpose.xlu0.b32.cont [11/16] 0.0, 128
      %1943 = vxpose.xlu0.b32.cont [12/16] 0.0, 128
      %1944 = vxpose.xlu0.b32.cont [13/16] 0.0, 128
      %1945 = vxpose.xlu0.b32.cont [14/16] 0.0, 128
      %1946 = vxpose.xlu0.b32.cont [15/16] 0.0, 128
      %1947 = vxpose.xlu0.b32.end [16/16] 0.0, 128
      %v1948 = vpop.trf.xlu0
      %v1949 = vpop.trf.xlu0
      %v1950 = vpop.trf.xlu0
      %v1951 = vpop.trf.xlu0
      %v1952 = vpop.trf.xlu0
      %v1953 = vpop.trf.xlu0
      %v1954 = vpop.trf.xlu0
      %v1955 = vpop.trf.xlu0
      %v1956 = vpop.trf.xlu0
      %v1957 = vpop.trf.xlu0
      %v1958 = vpop.trf.xlu0
      %v1959 = vpop.trf.xlu0
      %v1960 = vpop.trf.xlu0
      %v1961 = vpop.trf.xlu0
      %v1962 = vpop.trf.xlu0
      %v1963 = vpop.trf.xlu0
      %v1965 = vsel %vm918, %v1948, 0
      %v1968 = vsel %vm918, %v1949, 0
      %v1971 = vsel %vm925, %v1848, 0
      %1973 = vmatprep.subr.mxu0 0.0
      %1974 = vmatpush1.msra.mxu0 %v1843
      %1975 = vmatprep.subr.mxu0 0.0
      %1976 = vmatpush1.msra.mxu0 %v1971
      %1977 = vmatprep.subr.mxu0 0.0
      %1978 = vmatpush1.msra.mxu0 0.0
      %1979 = vmatprep.subr.mxu0 0.0
      %1980 = vmatpush1.msra.mxu0 0.0
      %1981 = vmatprep.subr.mxu0 0.0
      %1982 = vmatpush1.msra.mxu0 0.0
      %1983 = vmatprep.subr.mxu0 0.0
      %1984 = vmatpush1.msra.mxu0 0.0
      %1985 = vmatprep.subr.mxu0 0.0
      %1986 = vmatpush1.msra.mxu0 0.0
      %1987 = vmatprep.subr.mxu0 0.0
      %1988 = vmatpush1.msra.mxu0 0.0
      %1989 = vmatprep.subr.mxu0 0.0
      %1990 = vmatpush1.msra.mxu0 0.0
      %1991 = vmatprep.subr.mxu0 0.0
      %1992 = vmatpush1.msra.mxu0 0.0
      %1993 = vmatprep.subr.mxu0 0.0
      %1994 = vmatpush1.msra.mxu0 0.0
      %1995 = vmatprep.subr.mxu0 0.0
      %1996 = vmatpush1.msra.mxu0 0.0
      %1997 = vmatprep.subr.mxu0 0.0
      %1998 = vmatpush1.msra.mxu0 0.0
      %1999 = vmatprep.subr.mxu0 0.0
      %2000 = vmatpush1.msra.mxu0 0.0
      %2001 = vmatprep.subr.mxu0 0.0
      %2002 = vmatpush1.msra.mxu0 0.0
      %2003 = vmatprep.subr.mxu0 0.0
      %2004 = vmatpush1.msra.mxu0 0.0
      %2005 = vmatprep.subr.mxu0 0.0
      %2006 = vmatpush1.msra.mxu0 0.0
      %2007 = vmatprep.subr.mxu0 0.0
      %2008 = vmatpush1.msra.mxu0 0.0
      %2009 = vmatprep.subr.mxu0 0.0
      %2010 = vmatpush1.msra.mxu0 0.0
      %2011 = vmatprep.subr.mxu0 0.0
      %2012 = vmatpush1.msra.mxu0 0.0
      %2013 = vmatprep.subr.mxu0 0.0
      %2014 = vmatpush1.msra.mxu0 0.0
      %2015 = vmatprep.subr.mxu0 0.0
      %2016 = vmatpush1.msra.mxu0 0.0
      %2017 = vmatprep.subr.mxu0 0.0
      %2018 = vmatpush1.msra.mxu0 0.0
      %2019 = vmatprep.subr.mxu0 0.0
      %2020 = vmatpush1.msra.mxu0 0.0
      %2021 = vmatprep.subr.mxu0 0.0
      %2022 = vmatpush1.msra.mxu0 0.0
      %2023 = vmatprep.subr.mxu0 0.0
      %2024 = vmatpush1.msra.mxu0 0.0
      %2025 = vmatprep.subr.mxu0 0.0
      %2026 = vmatpush1.msra.mxu0 0.0
      %2027 = vmatprep.subr.mxu0 0.0
      %2028 = vmatpush1.msra.mxu0 0.0
      %2029 = vmatprep.subr.mxu0 0.0
      %2030 = vmatpush1.msra.mxu0 0.0
      %2031 = vmatprep.subr.mxu0 0.0
      %2032 = vmatpush1.msra.mxu0 0.0
      %2033 = vmatprep.subr.mxu0 0.0
      %2034 = vmatpush1.msra.mxu0 0.0
      %2035 = vmatprep.subr.mxu0 0.0
      %2036 = vmatpush1.msra.mxu0 0.0
      %2037 = vmatprep.mubr.f32.mxu0 0.0
      %2038 = vmatmul.mubr.f32.gmra.mrb[0].mxu0 %v1965
      %v2039 = vpop.f32.mrb[0].mxu0
      %v2040 = vadd.f32 0.0, %v2039
      %v2041 = vpop.f32.mrb[0].mxu0
      %2042 = vmatprep.mubr.f32.mxu0 0.0
      %2043 = vmatmul.mubr.f32.gmra.mrb[0].mxu0 %v1968
      %v2044 = vpop.f32.mrb[0].mxu0
      %v2045 = vadd.f32 0.0, %v2044
      %v2046 = vpop.f32.mrb[0].mxu0
      %2047 = vdwg.mxu0
      %v2048 = vmul.f32 %v2040, 0.2581989
      %v2049 = vmul.f32 %v2045, 0.2581989
      %v2050 = vadd.f32 %v2048, %v1682
      %v2051 = vadd.f32 %v2049, %v1683
      %vm2052 = vcmask 130048
      %v2053 = vsel %vm2052, %v2050, -inf
      %2054 = vmax.xlane.f32.xlu0 %v2053
      %v2055 = vpop.xlane.xlu0 %2054
      %v2056 = vsel %vm2052, %v2051, -inf
      %2057 = vmax.xlane.f32.xlu0 %v2056
      %v2058 = vpop.xlane.xlu0 %2057
      %v2059 = vsub.f32 %v2050, %v2055
      %v2060 = vsub.f32 %v2051, %v2058
      %v2061 = vmul.f32 %v2059, 1.442695
      %v2062 = vpow.pop %v2061
      %v2063 = vmul.f32 %v2060, 1.442695
      %v2064 = vpow.pop %v2063
      %v2065 = vsel %vm2052, %v2062, 0.0
      %2066 = vadd.xlane.f32.xlu0 %v2065
      %v2067 = vpop.xlane.xlu0 %2066
      %v2068 = vsel %vm2052, %v2064, 0.0
      %2069 = vadd.xlane.f32.xlu0 %v2068
      %v2070 = vpop.xlane.xlu0 %2069
      %v2071 = vrcp.pop %v2067
      %v2072 = vmul.f32 %v2062, %v2071
      %v2073 = vrcp.pop %v2070
      %v2074 = vmul.f32 %v2064, %v2073
      %2075 = vxpose.xlu0.b32.start [1/16] %v2072, 128
      %2076 = vxpose.xlu0.b32.cont [2/16] %v2074, 128
      %2077 = vxpose.xlu0.b32.cont [3/16] 0.0, 128
      %2078 = vxpose.xlu0.b32.cont [4/16] 0.0, 128
      %2079 = vxpose.xlu0.b32.cont [5/16] 0.0, 128
      %2080 = vxpose.xlu0.b32.cont [6/16] 0.0, 128
      %2081 = vxpose.xlu0.b32.cont [7/16] 0.0, 128
      %2082 = vxpose.xlu0.b32.cont [8/16] 0.0, 128
      %2083 = vxpose.xlu0.b32.cont [9/16] 0.0, 128
      %2084 = vxpose.xlu0.b32.cont [10/16] 0.0, 128
      %2085 = vxpose.xlu0.b32.cont [11/16] 0.0, 128
      %2086 = vxpose.xlu0.b32.cont [12/16] 0.0, 128
      %2087 = vxpose.xlu0.b32.cont [13/16] 0.0, 128
      %2088 = vxpose.xlu0.b32.cont [14/16] 0.0, 128
      %2089 = vxpose.xlu0.b32.cont [15/16] 0.0, 128
      %2090 = vxpose.xlu0.b32.end [16/16] 0.0, 128
      %v2091 = vpop.trf.xlu0
      %v2092 = vpop.trf.xlu0
      %v2093 = vpop.trf.xlu0
      %v2094 = vpop.trf.xlu0
      %v2095 = vpop.trf.xlu0
      %v2096 = vpop.trf.xlu0
      %v2097 = vpop.trf.xlu0
      %v2098 = vpop.trf.xlu0
      %v2099 = vpop.trf.xlu0
      %v2100 = vpop.trf.xlu0
      %v2101 = vpop.trf.xlu0
      %v2102 = vpop.trf.xlu0
      %v2103 = vpop.trf.xlu0
      %v2104 = vpop.trf.xlu0
      %v2105 = vpop.trf.xlu0
      %v2106 = vpop.trf.xlu0
      %v2108 = vsel %vm2052, %v2091, 0
      %v2111 = vsel %vm2052, %v2092, 0
      %2113 = vmatprep.subr.mxu0 0.0
      %2114 = vmatpush1.msra.mxu0 %v1684
      %2115 = vmatprep.subr.mxu0 0.0
      %2116 = vmatpush1.msra.mxu0 %v1685
      %2117 = vmatprep.subr.mxu0 0.0
      %2118 = vmatpush1.msra.mxu0 0.0
      %2119 = vmatprep.subr.mxu0 0.0
      %2120 = vmatpush1.msra.mxu0 0.0
      %2121 = vmatprep.subr.mxu0 0.0
      %2122 = vmatpush1.msra.mxu0 0.0
      %2123 = vmatprep.subr.mxu0 0.0
      %2124 = vmatpush1.msra.mxu0 0.0
      %2125 = vmatprep.subr.mxu0 0.0
      %2126 = vmatpush1.msra.mxu0 0.0
      %2127 = vmatprep.subr.mxu0 0.0
      %2128 = vmatpush1.msra.mxu0 0.0
      %2129 = vmatprep.subr.mxu0 0.0
      %2130 = vmatpush1.msra.mxu0 0.0
      %2131 = vmatprep.subr.mxu0 0.0
      %2132 = vmatpush1.msra.mxu0 0.0
      %2133 = vmatprep.subr.mxu0 0.0
      %2134 = vmatpush1.msra.mxu0 0.0
      %2135 = vmatprep.subr.mxu0 0.0
      %2136 = vmatpush1.msra.mxu0 0.0
      %2137 = vmatprep.subr.mxu0 0.0
      %2138 = vmatpush1.msra.mxu0 0.0
      %2139 = vmatprep.subr.mxu0 0.0
      %2140 = vmatpush1.msra.mxu0 0.0
      %2141 = vmatprep.subr.mxu0 0.0
      %2142 = vmatpush1.msra.mxu0 0.0
      %2143 = vmatprep.subr.mxu0 0.0
      %2144 = vmatpush1.msra.mxu0 0.0
      %2145 = vmatprep.subr.mxu0 0.0
      %2146 = vmatpush1.msra.mxu0 0.0
      %2147 = vmatprep.subr.mxu0 0.0
      %2148 = vmatpush1.msra.mxu0 0.0
      %2149 = vmatprep.subr.mxu0 0.0
      %2150 = vmatpush1.msra.mxu0 0.0
      %2151 = vmatprep.subr.mxu0 0.0
      %2152 = vmatpush1.msra.mxu0 0.0
      %2153 = vmatprep.subr.mxu0 0.0
      %2154 = vmatpush1.msra.mxu0 0.0
      %2155 = vmatprep.subr.mxu0 0.0
      %2156 = vmatpush1.msra.mxu0 0.0
      %2157 = vmatprep.subr.mxu0 0.0
      %2158 = vmatpush1.msra.mxu0 0.0
      %2159 = vmatprep.subr.mxu0 0.0
      %2160 = vmatpush1.msra.mxu0 0.0
      %2161 = vmatprep.subr.mxu0 0.0
      %2162 = vmatpush1.msra.mxu0 0.0
      %2163 = vmatprep.subr.mxu0 0.0
      %2164 = vmatpush1.msra.mxu0 0.0
      %2165 = vmatprep.subr.mxu0 0.0
      %2166 = vmatpush1.msra.mxu0 0.0
      %2167 = vmatprep.subr.mxu0 0.0
      %2168 = vmatpush1.msra.mxu0 0.0
      %2169 = vmatprep.subr.mxu0 0.0
      %2170 = vmatpush1.msra.mxu0 0.0
      %2171 = vmatprep.subr.mxu0 0.0
      %2172 = vmatpush1.msra.mxu0 0.0
      %2173 = vmatprep.subr.mxu0 0.0
      %2174 = vmatpush1.msra.mxu0 0.0
      %2175 = vmatprep.subr.mxu0 0.0
      %2176 = vmatpush1.msra.mxu0 0.0
      %2177 = vmatprep.mubr.f32.mxu0 0.0
      %2178 = vmatmul.mubr.f32.gmra.mrb[0].mxu0 %v2108
      %v2179 = vpop.f32.mrb[0].mxu0
      %v2180 = vadd.f32 0.0, %v2179
      %v2181 = vpop.f32.mrb[0].mxu0
      %2182 = vmatprep.mubr.f32.mxu0 0.0
      %2183 = vmatmul.mubr.f32.gmra.mrb[0].mxu0 %v2111
      %v2184 = vpop.f32.mrb[0].mxu0
      %v2185 = vadd.f32 0.0, %v2184
      %v2186 = vpop.f32.mrb[0].mxu0
      %2187 = vdwg.mxu0
      %v2189 = vsel %vm2052, %v1924, 0
      %v2192 = vsel %vm2052, %v1929, 0
      %2194 = vmatprep.subr.mxu0 0.0
      %2195 = vmatpush1.msra.mxu0 %v2180
      %2196 = vmatprep.subr.mxu0 0.0
      %2197 = vmatpush1.msra.mxu0 %v2185
      %2198 = vmatprep.subr.mxu0 0.0
      %2199 = vmatpush1.msra.mxu0 0.0
      %2200 = vmatprep.subr.mxu0 0.0
      %2201 = vmatpush1.msra.mxu0 0.0
      %2202 = vmatprep.subr.mxu0 0.0
      %2203 = vmatpush1.msra.mxu0 0.0
      %2204 = vmatprep.subr.mxu0 0.0
      %2205 = vmatpush1.msra.mxu0 0.0
      %2206 = vmatprep.subr.mxu0 0.0
      %2207 = vmatpush1.msra.mxu0 0.0
      %2208 = vmatprep.subr.mxu0 0.0
      %2209 = vmatpush1.msra.mxu0 0.0
      %2210 = vmatprep.subr.mxu0 0.0
      %2211 = vmatpush1.msra.mxu0 0.0
      %2212 = vmatprep.subr.mxu0 0.0
      %2213 = vmatpush1.msra.mxu0 0.0
      %2214 = vmatprep.subr.mxu0 0.0
      %2215 = vmatpush1.msra.mxu0 0.0
      %2216 = vmatprep.subr.mxu0 0.0
      %2217 = vmatpush1.msra.mxu0 0.0
      %2218 = vmatprep.subr.mxu0 0.0
      %2219 = vmatpush1.msra.mxu0 0.0
      %2220 = vmatprep.subr.mxu0 0.0
      %2221 = vmatpush1.msra.mxu0 0.0
      %2222 = vmatprep.subr.mxu0 0.0
      %2223 = vmatpush1.msra.mxu0 0.0
      %2224 = vmatprep.subr.mxu0 0.0
      %2225 = vmatpush1.msra.mxu0 0.0
      %2226 = vmatprep.subr.mxu0 0.0
      %2227 = vmatpush1.msra.mxu0 0.0
      %2228 = vmatprep.subr.mxu0 0.0
      %2229 = vmatpush1.msra.mxu0 0.0
      %2230 = vmatprep.subr.mxu0 0.0
      %2231 = vmatpush1.msra.mxu0 0.0
      %2232 = vmatprep.subr.mxu0 0.0
      %2233 = vmatpush1.msra.mxu0 0.0
      %2234 = vmatprep.subr.mxu0 0.0
      %2235 = vmatpush1.msra.mxu0 0.0
      %2236 = vmatprep.subr.mxu0 0.0
      %2237 = vmatpush1.msra.mxu0 0.0
      %2238 = vmatprep.subr.mxu0 0.0
      %2239 = vmatpush1.msra.mxu0 0.0
      %2240 = vmatprep.subr.mxu0 0.0
      %2241 = vmatpush1.msra.mxu0 0.0
      %2242 = vmatprep.subr.mxu0 0.0
      %2243 = vmatpush1.msra.mxu0 0.0
      %2244 = vmatprep.subr.mxu0 0.0
      %2245 = vmatpush1.msra.mxu0 0.0
      %2246 = vmatprep.subr.mxu0 0.0
      %2247 = vmatpush1.msra.mxu0 0.0
      %2248 = vmatprep.subr.mxu0 0.0
      %2249 = vmatpush1.msra.mxu0 0.0
      %2250 = vmatprep.subr.mxu0 0.0
      %2251 = vmatpush1.msra.mxu0 0.0
      %2252 = vmatprep.subr.mxu0 0.0
      %2253 = vmatpush1.msra.mxu0 0.0
      %2254 = vmatprep.subr.mxu0 0.0
      %2255 = vmatpush1.msra.mxu0 0.0
      %2256 = vmatprep.subr.mxu0 0.0
      %2257 = vmatpush1.msra.mxu0 0.0
      %2258 = vmatprep.mubr.f32.mxu0 0.0
      %2259 = vmatmul.mubr.f32.gmra.mrb[0].mxu0 %v2189
      %v2260 = vpop.f32.mrb[0].mxu0
      %v2261 = vadd.f32 0.0, %v2260
      %v2262 = vpop.f32.mrb[0].mxu0
      %2263 = vmatprep.mubr.f32.mxu0 0.0
      %2264 = vmatmul.mubr.f32.gmra.mrb[0].mxu0 %v2192
      %v2265 = vpop.f32.mrb[0].mxu0
      %v2266 = vadd.f32 0.0, %v2265
      %v2267 = vpop.f32.mrb[0].mxu0
      %2268 = vdwg.mxu0
      %v2269 = vld [vmem:[%s13] sm:$0xff]
      %v2270 = vld [vmem:[%s13 + $0x8] sm:$0x7f]
      %2272 = vset.pattern.permute.xlu0 0
      %2273 = vperm.xlu0 %2272, %v2261
      %v2274 = vpop.permute.xlu0 %2273
      %2277 = vset.pattern.permute.xlu0 0
      %2278 = vperm.xlu0 %2277, %v2266
      %v2279 = vpop.permute.xlu0 %2278
      %v2281 = vmul.f32 %v2274, %v2269
      %v2282 = vmul.f32 %v2279, %v2270
      %v2283 = vadd.f32 %v2281, 0.0
      %v2284 = vadd.f32 %v2282, 0.0
      %s2285 = scalar_lea.vmem %s13, 16
      %v2286 = vld [vmem:[%s2285] sm:$0xff]
      %v2287 = vld [vmem:[%s2285 + $0x8] sm:$0x7f]
      %2288 = vset.pattern.permute.xlu0 1
      %2289 = vperm.xlu0 %2288, %v2261
      %v2290 = vpop.permute.xlu0 %2289
      %2292 = vset.pattern.permute.xlu0 1
      %2293 = vperm.xlu0 %2292, %v2266
      %v2294 = vpop.permute.xlu0 %2293
      %v2296 = vmul.f32 %v2290, %v2286
      %v2297 = vmul.f32 %v2294, %v2287
      %v2298 = vadd.f32 %v2283, %v2296
      %v2299 = vadd.f32 %v2284, %v2297
      %vm2300 = vcmask 31744
      %v2301 = vsel %vm2300, %v2298, 0.0
      %vm2302 = vcmask 30720
      %v2303 = vsel %vm2302, %v2299, 0.0
      %v2304 = vadd.f32 %v2301, %v2303
      %v2305 = vrot.slane %v2304, 4
      %v2306 = vadd.f32 %v2304, %v2305
      %v2307 = vrot.slane %v2306, 2
      %v2308 = vadd.f32 %v2306, %v2307
      %v2309 = vrot.slane %v2308, 1
      %v2310 = vadd.f32 %v2308, %v2309
      %v2311 = vld [vmem:[%s14] sm:$0x1]
      %v2312 = vadd.f32 %v2310, %v2311
      %vm2313 = vcmask 24576
      %v2314 = vsel %vm2313, %v2312, -inf
      %2315 = vmax.xlane.f32.xlu0 %v2314
      %v2316 = vpop.xlane.xlu0 %2315
      %v2317 = vsub.f32 %v2312, %v2316
      %v2318 = vmul.f32 %v2317, 1.442695
      %v2319 = vpow.pop %v2318
      %v2320 = vsel %vm2313, %v2319, 0.0
      %2321 = vadd.xlane.f32.xlu0 %v2320
      %v2322 = vpop.xlane.xlu0 %2321
      %v2323 = vrcp.pop %v2322
      %v2324 = vmul.f32 %v2319, %v2323
      %2325 = vst.msk [vmem:[%s487] sm:$0x1] %vm2313, %v2324
      %p2326 = scmp.lt.s32.totalorder %s26, 1
      %s2327 = scalar_select %p2326, %s26, 1
      %s2328 = scalar_lea.vmem %s15, %s2327
      // Predicated region
      $region81: #{dfast_for_classification.1} parent=79 // pred_check
        %p2329 = pneg %p364
      $region82: #{dfast_for_classification.1} parent=79 // pred_check_branch
        %2331 = sbr.rel (%p2329) target = $region84
      $region83: #{dfast_for_classification.1} parent=79 // pred_region
        _
      $region84: #{dfast_for_classification.1} parent=79 // pred_fallthru
        _
    $region80: #{dfast_for_classification.1} parent=5 // pred_fallthru
      _
    %p2332 = scmp.le.s32.totalorder 2, %s21
    // Predicated region
    $region85: #{dfast_for_classification.1} parent=5 // pred_check
      %p2333 = pneg %p2332
    $region86: #{dfast_for_classification.1} parent=5 // pred_check_branch
      %2335 = sbr.rel (%p2333) target = $region88
    $region87: #{dfast_for_classification.1} parent=5 // pred_region
      %s2336 = ssub.s32 %s21, 2
      // Predicated region
      $region89: #{dfast_for_classification.1} parent=87 // pred_check
        %p2337 = pneg %p370
      $region90: #{dfast_for_classification.1} parent=87 // pred_check_branch
        %2339 = sbr.rel (%p2337) target = $region92
      $region91: #{dfast_for_classification.1} parent=87 // pred_region
        %p2340 = scmp.lt.s32.totalorder %s27, 1
        %s2341 = scalar_select %p2340, %s27, 1
        %s2342 = scalar_lea.vmem %s15, %s2341
      $region92: #{dfast_for_classification.1} parent=87 // pred_fallthru
        _
    $region88: #{dfast_for_classification.1} parent=5 // pred_fallthru
      _
  $region6: #{dfast_for_classification.1} parent=0 // loop_footer
    %s25 = sadd.s32 1, %s21
  $region7: #{dfast_for_classification.1} parent=0 // loop_footer_branch
    %20 = sbr.rel target = $region3
  $region8: #{dfast_for_classification.1} parent=0 // loop_exit
    _

</llo_original>
